<compile_context>
chip_gen: v5e
topology: v5e:2x2
jax: 0.10.0
libtpu: 0.0.40
codegen_flags: <defaults>
</compile_context>

<pallas_src>
import functools
import math

import jax
import jax.numpy as jnp
from jax import lax
from jax.experimental import pallas as pl
from jax.experimental.pallas import tpu as pltpu


LANE = 128   # lane-dense channel padding
TM = 128     # GEMM row tile
TK = 128     # GEMM reduction tile
TN = 128     # GEMM col tile


def round_up(x, m):
    return ((x + m - 1) // m) * m


def pad_to(x, shape):
    return jnp.pad(x, [(0, s - d) for d, s in zip(x.shape, shape)])


def _zero_idx(ndim):
    return lambda i: (0,) * ndim


# ----------------------------------------------------------------------------
# Kernels
# ----------------------------------------------------------------------------

def _gemm_bn_kernel(x_ref, w_ref, s_ref, b_ref, o_ref, acc_ref, *, relu):
    """Tiled bf16 GEMM, f32 accum, folded-BN (+ReLU) epilogue.
    grid = (M/TM, N/TN, K/TK)."""
    @pl.when(pl.program_id(2) == 0)
    def _():
        acc_ref[...] = jnp.zeros_like(acc_ref)

    acc_ref[...] += jnp.dot(x_ref[...], w_ref[...],
                            preferred_element_type=jnp.float32)

    @pl.when(pl.program_id(2) == pl.num_programs(2) - 1)
    def _():
        y = acc_ref[...] * s_ref[...] + b_ref[...]
        if relu:
            y = jnp.maximum(y, 0.0)
        o_ref[...] = y.astype(o_ref.dtype)


def _conv3x3_kernel(x_hbm, w_ref, s_ref, b_ref, o_ref, lhs_buf, sem,
                    *, tm, offsets, relu):
    """3x3 / stride-1 / pad-1 conv as 9 shifted GEMM taps (no im2col).

    x_hbm: flat zero-padded image (rows, Cin) left in HBM (pl.ANY).  One DMA
    per M-tile (guarded on j==0) pulls tm + margin rows into VMEM; each tap
    is a statically shifted slice of that buffer feeding an MXU dot."""
    i = pl.program_id(0)

    @pl.when(pl.program_id(1) == 0)         # new M tile -> refresh LHS window
    def _():
        copy = pltpu.make_async_copy(
            x_hbm.at[pl.ds(i * tm, lhs_buf.shape[0]), :], lhs_buf, sem.at[0])
        copy.start()
        copy.wait()

    acc = jnp.zeros(o_ref.shape, jnp.float32)
    for t, off in enumerate(offsets):
        a = lhs_buf[off:off + tm, :].astype(jnp.bfloat16)
        acc = acc + jnp.dot(a, w_ref[t], preferred_element_type=jnp.float32)

    y = acc * s_ref[...] + b_ref[...]
    if relu:
        y = jnp.maximum(y, 0.0)
    o_ref[...] = y.astype(o_ref.dtype)


def _se_gate_kernel(x_ref, w1_ref, b1_ref, w2_ref, b2_ref, o_ref):
    """Fused SE branch: GAP -> fc1 -> ReLU -> fc2 -> sigmoid (one launch)."""
    p = jnp.mean(x_ref[...].astype(jnp.float32), axis=1)            # (N, C)
    h = jnp.dot(p, w1_ref[...], preferred_element_type=jnp.float32) + b1_ref[...]
    h = jnp.maximum(h, 0.0)
    g = jnp.dot(h, w2_ref[...], preferred_element_type=jnp.float32) + b2_ref[...]
    o_ref[...] = jax.nn.sigmoid(g)


def _se_res_kernel(x_ref, g_ref, r_ref, o_ref):
    """out = relu(x * sigmoid_gate + residual), per batch row."""
    y = (x_ref[...].astype(jnp.float32) * g_ref[...]
         + r_ref[...].astype(jnp.float32))
    o_ref[...] = jnp.maximum(y, 0.0).astype(o_ref.dtype)


def _pool_l2n_kernel(x_ref, o_ref, *, c_true, eps, pool):
    """Fused global pooling (MAC max / SPoC mean) + L2N over channels."""
    xf = x_ref[...].astype(jnp.float32)
    if pool == "SPoc":
        f = jnp.mean(xf, axis=1)
    else:                                    # 'Mac'
        f = jnp.max(xf, axis=1)
    mask = lax.broadcasted_iota(jnp.int32, f.shape, 1) < c_true
    f = jnp.where(mask, f, 0.0)              # ignore lane-padding channels
    nrm = jnp.sqrt(jnp.sum(f * f, axis=1, keepdims=True))
    o_ref[...] = f / (nrm + eps)


# ----------------------------------------------------------------------------
# pallas_call wrappers
# ----------------------------------------------------------------------------

def _full_block_call(kernel, out_shape, *args):
    """Single-block call for tiny tensors (SE gate, final pooling)."""
    return pl.pallas_call(
        kernel,
        out_shape=out_shape,
        grid=(1,),
        in_specs=[pl.BlockSpec(a.shape, _zero_idx(a.ndim)) for a in args],
        out_specs=pl.BlockSpec(out_shape.shape, _zero_idx(len(out_shape.shape))),
    )(*args)


def gemm_bn(x, w, scale, bias, relu):
    """y = relu?(x @ w * scale + bias); w pre-padded (Kp, Np) bf16."""
    m, k = x.shape
    kp, n_out = w.shape
    mp = round_up(m, TM)
    x = x.astype(jnp.bfloat16)
    if mp != m or kp != k:
        x = jnp.pad(x, ((0, mp - m), (0, kp - k)))
    out = pl.pallas_call(
        functools.partial(_gemm_bn_kernel, relu=relu),
        out_shape=jax.ShapeDtypeStruct((mp, n_out), jnp.bfloat16),
        grid=(mp // TM, n_out // TN, kp // TK),
        in_specs=[pl.BlockSpec((TM, TK), lambda i, j, kk: (i, kk)),
                  pl.BlockSpec((TK, TN), lambda i, j, kk: (kk, j)),
                  pl.BlockSpec((1, TN), lambda i, j, kk: (0, j)),
                  pl.BlockSpec((1, TN), lambda i, j, kk: (0, j))],
        out_specs=pl.BlockSpec((TM, TN), lambda i, j, kk: (i, j)),
        scratch_shapes=[pltpu.VMEM((TM, TN), jnp.float32)],
        compiler_params=pltpu.CompilerParams(
            dimension_semantics=("parallel", "parallel", "arbitrary")),
    )(x, w, scale, bias)
    return out[:m]


def conv1x1_bn(x, w, scale, bias, relu, stride=1):
    if stride != 1:
        x = x[:, ::stride, ::stride, :]
    n, h, wd, cp = x.shape
    y = gemm_bn(x.reshape(n * h * wd, cp), w, scale, bias, relu)
    return y.reshape(n, h, wd, -1)


def conv3x3_bn(x, w9, scale, bias, relu=True):
    """3x3 / stride-1 / pad-1 conv + folded BN (+ReLU), no im2col copy."""
    n, h, wd, cp = x.shape
    hp, wp = h + 2, wd + 2
    n_out = w9.shape[-1]
    m = n * hp * wp
    mp = round_up(m, TM)
    extra = round_up(2 * wp + 2, 8)
    rows = TM + extra
    # flat zero-padded image; extra zero rows so every DMA window stays in-bounds
    # TODO(synk): keep the flat LHS in bf16 once unaligned packed-sublane slices are verified.
    xf = jnp.pad(x.astype(jnp.float32), ((0, 0), (1, 1), (1, 1), (0, 0)))
    xf = jnp.pad(xf.reshape(m, cp), ((0, mp + extra - m), (0, 0)))
    offsets = tuple(di * wp + dj for di in range(3) for dj in range(3))
    out = pl.pallas_call(
        functools.partial(_conv3x3_kernel, tm=TM, offsets=offsets, relu=relu),
        out_shape=jax.ShapeDtypeStruct((mp, n_out), jnp.bfloat16),
        grid=(mp // TM, n_out // TN),
        in_specs=[pl.BlockSpec(memory_space=pl.ANY),
                  pl.BlockSpec((9, cp, TN), lambda i, j: (0, 0, j)),
                  pl.BlockSpec((1, TN), lambda i, j: (0, j)),
                  pl.BlockSpec((1, TN), lambda i, j: (0, j))],
        out_specs=pl.BlockSpec((TM, TN), lambda i, j: (i, j)),
        scratch_shapes=[pltpu.VMEM((rows, cp), jnp.float32),
                        pltpu.SemaphoreType.DMA((1,))],
        compiler_params=pltpu.CompilerParams(
            dimension_semantics=("parallel", "arbitrary")),
    )(xf, w9, scale, bias)
    return out[:m].reshape(n, hp, wp, n_out)[:, :h, :wd, :]


def se_scale_residual_relu(out3, gate, res3):
    n, hw, cp = out3.shape
    return pl.pallas_call(
        _se_res_kernel,
        out_shape=jax.ShapeDtypeStruct((n, hw, cp), jnp.bfloat16),
        grid=(n,),
        in_specs=[pl.BlockSpec((1, hw, cp), lambda b: (b, 0, 0)),
                  pl.BlockSpec((1, 1, cp), lambda b: (b, 0, 0)),
                  pl.BlockSpec((1, hw, cp), lambda b: (b, 0, 0))],
        out_specs=pl.BlockSpec((1, hw, cp), lambda b: (b, 0, 0)),
        compiler_params=pltpu.CompilerParams(dimension_semantics=("parallel",)),
    )(out3, gate.reshape(n, 1, cp), res3)


# ----------------------------------------------------------------------------
# Non-kernel glue (stem im2col, running-max pooling)
# ----------------------------------------------------------------------------

def _extract_patches(x, kh, kw, stride, pad, pad_value):
    # x: (N, H, W, C) -> (N, OH, OW, KH*KW, C)   [stem 7x7 only]
    n, h, w, c = x.shape
    xp = jnp.pad(x, ((0, 0), (pad, pad), (pad, pad), (0, 0)),
                 constant_values=pad_value)
    hp, wp = h + 2 * pad, w + 2 * pad
    oh = (hp - kh) // stride + 1
    ow = (wp - kw) // stride + 1
    cols = []
    for i in range(kh):
        for j in range(kw):
            cols.append(xp[:, i:i + stride * (oh - 1) + 1:stride,
                           j:j + stride * (ow - 1) + 1:stride, :])
    return jnp.stack(cols, axis=3), oh, ow


def max_pool_ceil(x, k=3, stride=2):
    # MaxPool2d(kernel=3, stride=2, ceil_mode=True) via running max (no 9x stack)
    n, h, w, c = x.shape
    oh = -(-(h - k) // stride) + 1
    ow = -(-(w - k) // stride) + 1
    ph = max((oh - 1) * stride + k - h, 0)
    pw = max((ow - 1) * stride + k - w, 0)
    xp = jnp.pad(x, ((0, 0), (0, ph), (0, pw), (0, 0)),
                 constant_values=-jnp.inf)
    out = None
    for i in range(k):
        for j in range(k):
            v = xp[:, i:i + stride * (oh - 1) + 1:stride,
                   j:j + stride * (ow - 1) + 1:stride, :]
            out = v if out is None else jnp.maximum(out, v)
    return out


# ----------------------------------------------------------------------------
# SE-ResNet bottleneck, backbone, full forward
# ----------------------------------------------------------------------------

def se_bottleneck(x, blk):
    residual = x
    out = conv1x1_bn(x, blk["w1"], blk["s1"], blk["b1"], relu=True,
                     stride=blk["stride"])
    out = conv3x3_bn(out, blk["w2"], blk["s2"], blk["b2"], relu=True)
    out = conv1x1_bn(out, blk["w3"], blk["s3"], blk["b3"], relu=False)
    if "wd" in blk:
        residual = conv1x1_bn(x, blk["wd"], blk["sd"], blk["bd"], relu=False,
                              stride=blk["stride"])

    n, h, w, cp = out.shape
    out3 = out.reshape(n, h * w, cp)
    res3 = residual.reshape(n, h * w, cp)

    # TODO(synk): GAP partial sums could be accumulated in the conv3 epilogue
    # to save one re-read of out3.
    gate = _full_block_call(
        _se_gate_kernel, jax.ShapeDtypeStruct((n, cp), jnp.float32),
        out3, blk["se_w1"], blk["se_b1"], blk["se_w2"], blk["se_b2"])
    y = se_scale_residual_relu(out3, gate, res3)
    return y.reshape(n, h, w, cp)


def seresnet152_forward(prep, data_nchw, feature_name="Mac", eps=1e-6):
    # data_nchw: (N, 3, H, W) float32 (PyTorch layout)
    x = jnp.transpose(data_nchw, (0, 2, 3, 1)).astype(jnp.float32)   # -> NHWC

    # layer0: conv7x7/s2 (im2col GEMM + fused BN/ReLU) -> 3x3/s2 ceil max-pool
    p, oh, ow = _extract_patches(x, 7, 7, 2, 3, 0.0)
    n = x.shape[0]
    y = gemm_bn(p.reshape(n * oh * ow, -1),
                prep["stem"]["w"], prep["stem"]["scale"], prep["stem"]["bias"],
                relu=True)
    x = y.reshape(n, oh, ow, -1)
    x = max_pool_ceil(x, 3, 2)

    # layer1..layer4 (backbone == children()[:-2])
    for layer in prep["layers"]:
        for blk in layer:
            x = se_bottleneck(x, blk)

    n, h, w, cp = x.shape
    if feature_name not in ("Mac", "SPoc"):
        # TODO(synk): rmac / ramac / Grmac poolings are external, undefined modules.
        raise NotImplementedError(feature_name)
    kern = functools.partial(_pool_l2n_kernel, c_true=prep["c_final"], eps=eps,
                             pool=feature_name)
    feat = _full_block_call(kern, jax.ShapeDtypeStruct((n, cp), jnp.float32),
                            x.reshape(n, h * w, cp))
    return feat[:, :prep["c_final"]]


# ----------------------------------------------------------------------------
# Deterministic synthetic parameters + prepare (fold BN, pad to 128 lanes, bf16)
# ----------------------------------------------------------------------------

CFG = dict(
    stem_width=16,
    planes=(8, 16, 32, 64),
    blocks=(1, 1, 1, 1),   # TODO(synk): se_resnet152 uses (3, 8, 36, 3)
    expansion=4,
    reduction=16,
)


def init_params(key, cfg):
    keys = iter(jax.random.split(key, 1024))

    def nk():
        return next(keys)

    def conv_w(kh, kw, cin, cout):
        fan_in = kh * kw * cin
        return (jax.random.normal(nk(), (kh, kw, cin, cout), jnp.float32)
                / math.sqrt(fan_in))

    def bn(c):
        return dict(
            gamma=1.0 + 0.1 * jax.random.normal(nk(), (c,), jnp.float32),
            beta=0.1 * jax.random.normal(nk(), (c,), jnp.float32),
            mean=0.1 * jax.random.normal(nk(), (c,), jnp.float32),
            var=1.0 + 0.1 * jax.random.uniform(nk(), (c,), jnp.float32),
        )

    params = dict(stem=dict(conv_w=conv_w(7, 7, 3, cfg["stem_width"]),
                            bn=bn(cfg["stem_width"])),
                  layers=[])
    inplanes = cfg["stem_width"]
    for si, (planes, nblocks) in enumerate(zip(cfg["planes"], cfg["blocks"])):
        stride0 = 1 if si == 0 else 2
        layer = []
        for bi in range(nblocks):
            stride = stride0 if bi == 0 else 1
            out_c = planes * cfg["expansion"]
            hidden = max(out_c // cfg["reduction"], 1)
            blk = dict(
                stride=stride,
                conv1_w=conv_w(1, 1, inplanes, planes), bn1=bn(planes),
                conv2_w=conv_w(3, 3, planes, planes), bn2=bn(planes),
                conv3_w=conv_w(1, 1, planes, out_c), bn3=bn(out_c),
                se_fc1_w=jax.random.normal(nk(), (out_c, hidden), jnp.float32) / math.sqrt(out_c),
                se_fc1_b=0.01 * jax.random.normal(nk(), (1, hidden), jnp.float32),
                se_fc2_w=jax.random.normal(nk(), (hidden, out_c), jnp.float32) / math.sqrt(hidden),
                se_fc2_b=0.01 * jax.random.normal(nk(), (1, out_c), jnp.float32),
            )
            if stride != 1 or inplanes != out_c:
                blk["down_w"] = conv_w(1, 1, inplanes, out_c)
                blk["down_bn"] = bn(out_c)
            layer.append(blk)
            inplanes = out_c
        params["layers"].append(layer)
    return params


def fold_bn(bn, eps=1e-5):
    scale = bn["gamma"] / jnp.sqrt(bn["var"] + eps)
    bias = bn["beta"] - bn["mean"] * scale
    return scale, bias


def prepare_params(params):
    """Fold BN into scale/bias, zero-pad channels to 128 lanes, cast GEMM
    weights to bf16 (inference-only preprocessing of a checkpoint)."""
    prep = {"layers": []}

    c0 = params["stem"]["conv_w"].shape[-1]
    c0p = round_up(c0, LANE)
    w = params["stem"]["conv_w"].reshape(-1, c0)           # (147, c0)
    kp = round_up(w.shape[0], LANE)
    s, b = fold_bn(params["stem"]["bn"])
    prep["stem"] = dict(w=pad_to(w, (kp, c0p)).astype(jnp.bfloat16),
                        scale=pad_to(s.reshape(1, -1), (1, c0p)),
                        bias=pad_to(b.reshape(1, -1), (1, c0p)))

    for layer in params["layers"]:
        pl_layer = []
        for blk in layer:
            cin = blk["conv1_w"].shape[2]
            pln = blk["conv1_w"].shape[3]
            outc = blk["conv3_w"].shape[3]
            hid = blk["se_fc1_w"].shape[1]
            cinp, plnp = round_up(cin, LANE), round_up(pln, LANE)
            outp, hidp = round_up(outc, LANE), round_up(hid, LANE)
            s1, b1 = fold_bn(blk["bn1"])
            s2, b2 = fold_bn(blk["bn2"])
            s3, b3 = fold_bn(blk["bn3"])
            d = dict(
                stride=blk["stride"],
                w1=pad_to(blk["conv1_w"].reshape(cin, pln), (cinp, plnp)).astype(jnp.bfloat16),
                s1=pad_to(s1.reshape(1, -1), (1, plnp)),
                b1=pad_to(b1.reshape(1, -1), (1, plnp)),
                w2=pad_to(blk["conv2_w"], (3, 3, plnp, plnp)).reshape(9, plnp, plnp).astype(jnp.bfloat16),
                s2=pad_to(s2.reshape(1, -1), (1, plnp)),
                b2=pad_to(b2.reshape(1, -1), (1, plnp)),
                w3=pad_to(blk["conv3_w"].reshape(pln, outc), (plnp, outp)).astype(jnp.bfloat16),
                s3=pad_to(s3.reshape(1, -1), (1, outp)),
                b3=pad_to(b3.reshape(1, -1), (1, outp)),
                se_w1=pad_to(blk["se_fc1_w"], (outp, hidp)),
                se_b1=pad_to(blk["se_fc1_b"], (1, hidp)),
                se_w2=pad_to(blk["se_fc2_w"], (hidp, outp)),
                se_b2=pad_to(blk["se_fc2_b"], (1, outp)),
            )
            if "down_w" in blk:
                sd, bd = fold_bn(blk["down_bn"])
                d["wd"] = pad_to(blk["down_w"].reshape(cin, outc), (cinp, outp)).astype(jnp.bfloat16)
                d["sd"] = pad_to(sd.reshape(1, -1), (1, outp))
                d["bd"] = pad_to(bd.reshape(1, -1), (1, outp))
            pl_layer.append(d)
        prep["layers"].append(pl_layer)

    prep["c_final"] = params["layers"][-1][-1]["conv3_w"].shape[3]
    return prep


# ----------------------------------------------------------------------------
# Self-check of the custom conv3x3 kernel against lax.conv (loose bf16 tol)
# ----------------------------------------------------------------------------

def _selfcheck_conv3x3(key):
    n, h, w, c = 2, 12, 12, 128
    kx, kw = jax.random.split(key)
    x = jax.random.normal(kx, (n, h, w, c), jnp.float32).astype(jnp.bfloat16)
    wt = jax.random.normal(kw, (3, 3, c, c), jnp.float32) / math.sqrt(9 * c)
    w9 = wt.astype(jnp.bfloat16).reshape(9, c, c)
    scale = jnp.ones((1, c), jnp.float32)
    bias = jnp.zeros((1, c), jnp.float32)
    out = conv3x3_bn(x, w9, scale, bias, relu=False).astype(jnp.float32)
    ref = lax.conv_general_dilated(
        x.astype(jnp.float32), w9.astype(jnp.float32).reshape(3, 3, c, c),
        window_strides=(1, 1), padding=((1, 1), (1, 1)),
        dimension_numbers=("NHWC", "HWIO", "NHWC"),
        precision=lax.Precision.HIGHEST)
    err = float(jnp.max(jnp.abs(out - ref)))
    assert err < 0.1, f"conv3x3 self-check failed: max |err| = {err}"


# ----------------------------------------------------------------------------
# Demo
# ----------------------------------------------------------------------------

if __name__ == "__main__":
    key = jax.random.PRNGKey(0)
    pkey, xkey, ckey = jax.random.split(key, 3)

    _selfcheck_conv3x3(ckey)

    params = init_params(pkey, CFG)
    prep = prepare_params(params)
    data = jax.random.normal(xkey, (2, 3, 64, 64), jnp.float32)   # NCHW like PyTorch

    fwd = jax.jit(lambda d: seresnet152_forward(prep, d, feature_name="Mac"))
    feat = jax.block_until_ready(fwd(data))

    assert feat.shape == (2, CFG["planes"][-1] * CFG["expansion"])
    assert bool(jnp.all(jnp.isfinite(feat)))
    norms = jnp.linalg.norm(feat, axis=1)
    assert bool(jnp.all(jnp.abs(norms - 1.0) < 1e-2))   # L2N => ~unit rows
    print("KERNEL_OK")
</pallas_src>

<mosaic_0001>
module attributes {stable_mosaic.version = 11 : i64} {
  func.func @_conv3x3_kernel(%arg0: i32, %arg1: i32, %arg2: memref<544x128xf32, #tpu.memory_space<any>>, %arg3: memref<9x128x128xbf16, #tpu.memory_space<vmem>>, %arg4: memref<1x128xf32, #tpu.memory_space<vmem>>, %arg5: memref<1x128xf32, #tpu.memory_space<vmem>>, %arg6: memref<128x128xbf16, #tpu.memory_space<vmem>>, %arg7: memref<160x128xf32, #tpu.memory_space<vmem>>, %arg8: memref<1x!tpu.dma_semaphore, #tpu.memory_space<semaphore_mem>>) attributes {dimension_semantics = [#tpu.dimension_semantics<parallel>, #tpu.dimension_semantics<arbitrary>], iteration_bounds = array<i64: 4, 1>, scalar_prefetch = 0 : i64, scratch_operands = 2 : i64, tpu.core_type = #tpu.core_type<tc>, window_params = [{}, {transform_indices = @transform_1, window_bounds = array<i64: 9, 128, 128>}, {transform_indices = @transform_2, window_bounds = array<i64: 1, 128>}, {transform_indices = @transform_3, window_bounds = array<i64: 1, 128>}, {transform_indices = @transform_4, window_bounds = array<i64: 128, 128>}]} {
    %c0_i32 = arith.constant 0 : i32
    %0 = arith.cmpi eq, %arg1, %c0_i32 : i32
    %1 = arith.extui %0 : i1 to i32
    %c0_i32_0 = arith.constant 0 : i32
    %2 = arith.cmpi ne, %1, %c0_i32_0 : i32
    scf.if %2 {
      %c128_i32 = arith.constant 128 : i32
      %66 = arith.muli %arg0, %c128_i32 : i32
      %c0_i32_46 = arith.constant 0 : i32
      %c0_i32_47 = arith.constant 0 : i32
      %67 = tpu.memref_slice %arg2[%66, %c0_i32_47] : memref<544x128xf32, #tpu.memory_space<any>> -> memref<160x128xf32, #tpu.memory_space<any>>
      %68 = tpu.memref_slice %arg8[%c0_i32_46] : memref<1x!tpu.dma_semaphore, #tpu.memory_space<semaphore_mem>> -> memref<1x!tpu.dma_semaphore, #tpu.memory_space<semaphore_mem>>
      %69 = tpu.memref_squeeze %68 : memref<1x!tpu.dma_semaphore, #tpu.memory_space<semaphore_mem>> -> memref<!tpu.dma_semaphore, #tpu.memory_space<semaphore_mem>>
      tpu.enqueue_dma source(%67 : memref<160x128xf32, #tpu.memory_space<any>>) target(%arg7 : memref<160x128xf32, #tpu.memory_space<vmem>>) target_semaphore(%69 : memref<!tpu.dma_semaphore, #tpu.memory_space<semaphore_mem>>)
      %c0_i32_48 = arith.constant 0 : i32
      %c0_i32_49 = arith.constant 0 : i32
      %70 = tpu.memref_slice %arg2[%66, %c0_i32_49] : memref<544x128xf32, #tpu.memory_space<any>> -> memref<160x128xf32, #tpu.memory_space<any>>
      %71 = tpu.memref_slice %arg8[%c0_i32_48] : memref<1x!tpu.dma_semaphore, #tpu.memory_space<semaphore_mem>> -> memref<1x!tpu.dma_semaphore, #tpu.memory_space<semaphore_mem>>
      %72 = tpu.memref_squeeze %71 : memref<1x!tpu.dma_semaphore, #tpu.memory_space<semaphore_mem>> -> memref<!tpu.dma_semaphore, #tpu.memory_space<semaphore_mem>>
      tpu.wait_dma2 semaphore(%72 : memref<!tpu.dma_semaphore, #tpu.memory_space<semaphore_mem>>) src(%70 : memref<160x128xf32, #tpu.memory_space<any>>) dst(%arg7 : memref<160x128xf32, #tpu.memory_space<vmem>>)
    } else {
    }
    %cst = arith.constant 0.000000e+00 : f32
    %3 = vector.broadcast %cst : f32 to vector<128x128xf32>
    %c0 = arith.constant 0 : index
    %c0_1 = arith.constant 0 : index
    %4 = vector.load %arg7[%c0, %c0_1] : memref<160x128xf32, #tpu.memory_space<vmem>>, vector<128x128xf32>
    %5 = arith.truncf %4 : vector<128x128xf32> to vector<128x128xbf16>
    %c0_2 = arith.constant 0 : index
    %c0_3 = arith.constant 0 : index
    %c0_4 = arith.constant 0 : index
    %6 = vector.load %arg3[%c0_2, %c0_3, %c0_4] : memref<9x128x128xbf16, #tpu.memory_space<vmem>>, vector<1x128x128xbf16>
    %7 = vector.shape_cast %6 : vector<1x128x128xbf16> to vector<128x128xbf16>
    %cst_5 = arith.constant dense<0.000000e+00> : vector<128x128xf32>
    %8 = tpu.matmul %5, %7, %cst_5 {dimension_numbers = #tpu.dot_dimension_numbers<[1], [0], [0], [1], [0, 0, 1, 1], [], []>} : vector<128x128xbf16>, vector<128x128xbf16>, vector<128x128xf32> -> vector<128x128xf32>
    %9 = arith.addf %3, %8 : vector<128x128xf32>
    %c1 = arith.constant 1 : index
    %c0_6 = arith.constant 0 : index
    %10 = vector.load %arg7[%c1, %c0_6] : memref<160x128xf32, #tpu.memory_space<vmem>>, vector<128x128xf32>
    %11 = arith.truncf %10 : vector<128x128xf32> to vector<128x128xbf16>
    %c1_7 = arith.constant 1 : index
    %c0_8 = arith.constant 0 : index
    %c0_9 = arith.constant 0 : index
    %12 = vector.load %arg3[%c1_7, %c0_8, %c0_9] : memref<9x128x128xbf16, #tpu.memory_space<vmem>>, vector<1x128x128xbf16>
    %13 = vector.shape_cast %12 : vector<1x128x128xbf16> to vector<128x128xbf16>
    %cst_10 = arith.constant dense<0.000000e+00> : vector<128x128xf32>
    %14 = tpu.matmul %11, %13, %cst_10 {dimension_numbers = #tpu.dot_dimension_numbers<[1], [0], [0], [1], [0, 0, 1, 1], [], []>} : vector<128x128xbf16>, vector<128x128xbf16>, vector<128x128xf32> -> vector<128x128xf32>
    %15 = arith.addf %9, %14 : vector<128x128xf32>
    %c2 = arith.constant 2 : index
    %c0_11 = arith.constant 0 : index
    %16 = vector.load %arg7[%c2, %c0_11] : memref<160x128xf32, #tpu.memory_space<vmem>>, vector<128x128xf32>
    %17 = arith.truncf %16 : vector<128x128xf32> to vector<128x128xbf16>
    %c2_12 = arith.constant 2 : index
    %c0_13 = arith.constant 0 : index
    %c0_14 = arith.constant 0 : index
    %18 = vector.load %arg3[%c2_12, %c0_13, %c0_14] : memref<9x128x128xbf16, #tpu.memory_space<vmem>>, vector<1x128x128xbf16>
    %19 = vector.shape_cast %18 : vector<1x128x128xbf16> to vector<128x128xbf16>
    %cst_15 = arith.constant dense<0.000000e+00> : vector<128x128xf32>
    %20 = tpu.matmul %17, %19, %cst_15 {dimension_numbers = #tpu.dot_dimension_numbers<[1], [0], [0], [1], [0, 0, 1, 1], [], []>} : vector<128x128xbf16>, vector<128x128xbf16>, vector<128x128xf32> -> vector<128x128xf32>
    %21 = arith.addf %15, %20 : vector<128x128xf32>
    %c14 = arith.constant 14 : index
    %c0_16 = arith.constant 0 : index
    %22 = vector.load %arg7[%c14, %c0_16] : memref<160x128xf32, #tpu.memory_space<vmem>>, vector<128x128xf32>
    %23 = arith.truncf %22 : vector<128x128xf32> to vector<128x128xbf16>
    %c3 = arith.constant 3 : index
    %c0_17 = arith.constant 0 : index
    %c0_18 = arith.constant 0 : index
    %24 = vector.load %arg3[%c3, %c0_17, %c0_18] : memref<9x128x128xbf16, #tpu.memory_space<vmem>>, vector<1x128x128xbf16>
    %25 = vector.shape_cast %24 : vector<1x128x128xbf16> to vector<128x128xbf16>
    %cst_19 = arith.constant dense<0.000000e+00> : vector<128x128xf32>
    %26 = tpu.matmul %23, %25, %cst_19 {dimension_numbers = #tpu.dot_dimension_numbers<[1], [0], [0], [1], [0, 0, 1, 1], [], []>} : vector<128x128xbf16>, vector<128x128xbf16>, vector<128x128xf32> -> vector<128x128xf32>
    %27 = arith.addf %21, %26 : vector<128x128xf32>
    %c15 = arith.constant 15 : index
    %c0_20 = arith.constant 0 : index
    %28 = vector.load %arg7[%c15, %c0_20] : memref<160x128xf32, #tpu.memory_space<vmem>>, vector<128x128xf32>
    %29 = arith.truncf %28 : vector<128x128xf32> to vector<128x128xbf16>
    %c4 = arith.constant 4 : index
    %c0_21 = arith.constant 0 : index
    %c0_22 = arith.constant 0 : index
    %30 = vector.load %arg3[%c4, %c0_21, %c0_22] : memref<9x128x128xbf16, #tpu.memory_space<vmem>>, vector<1x128x128xbf16>
    %31 = vector.shape_cast %30 : vector<1x128x128xbf16> to vector<128x128xbf16>
    %cst_23 = arith.constant dense<0.000000e+00> : vector<128x128xf32>
    %32 = tpu.matmul %29, %31, %cst_23 {dimension_numbers = #tpu.dot_dimension_numbers<[1], [0], [0], [1], [0, 0, 1, 1], [], []>} : vector<128x128xbf16>, vector<128x128xbf16>, vector<128x128xf32> -> vector<128x128xf32>
    %33 = arith.addf %27, %32 : vector<128x128xf32>
    %c16 = arith.constant 16 : index
    %c0_24 = arith.constant 0 : index
    %34 = vector.load %arg7[%c16, %c0_24] : memref<160x128xf32, #tpu.memory_space<vmem>>, vector<128x128xf32>
    %35 = arith.truncf %34 : vector<128x128xf32> to vector<128x128xbf16>
    %c5 = arith.constant 5 : index
    %c0_25 = arith.constant 0 : index
    %c0_26 = arith.constant 0 : index
    %36 = vector.load %arg3[%c5, %c0_25, %c0_26] : memref<9x128x128xbf16, #tpu.memory_space<vmem>>, vector<1x128x128xbf16>
    %37 = vector.shape_cast %36 : vector<1x128x128xbf16> to vector<128x128xbf16>
    %cst_27 = arith.constant dense<0.000000e+00> : vector<128x128xf32>
    %38 = tpu.matmul %35, %37, %cst_27 {dimension_numbers = #tpu.dot_dimension_numbers<[1], [0], [0], [1], [0, 0, 1, 1], [], []>} : vector<128x128xbf16>, vector<128x128xbf16>, vector<128x128xf32> -> vector<128x128xf32>
    %39 = arith.addf %33, %38 : vector<128x128xf32>
    %c28 = arith.constant 28 : index
    %c0_28 = arith.constant 0 : index
    %40 = vector.load %arg7[%c28, %c0_28] : memref<160x128xf32, #tpu.memory_space<vmem>>, vector<128x128xf32>
    %41 = arith.truncf %40 : vector<128x128xf32> to vector<128x128xbf16>
    %c6 = arith.constant 6 : index
    %c0_29 = arith.constant 0 : index
    %c0_30 = arith.constant 0 : index
    %42 = vector.load %arg3[%c6, %c0_29, %c0_30] : memref<9x128x128xbf16, #tpu.memory_space<vmem>>, vector<1x128x128xbf16>
    %43 = vector.shape_cast %42 : vector<1x128x128xbf16> to vector<128x128xbf16>
    %cst_31 = arith.constant dense<0.000000e+00> : vector<128x128xf32>
    %44 = tpu.matmul %41, %43, %cst_31 {dimension_numbers = #tpu.dot_dimension_numbers<[1], [0], [0], [1], [0, 0, 1, 1], [], []>} : vector<128x128xbf16>, vector<128x128xbf16>, vector<128x128xf32> -> vector<128x128xf32>
    %45 = arith.addf %39, %44 : vector<128x128xf32>
    %c29 = arith.constant 29 : index
    %c0_32 = arith.constant 0 : index
    %46 = vector.load %arg7[%c29, %c0_32] : memref<160x128xf32, #tpu.memory_space<vmem>>, vector<128x128xf32>
    %47 = arith.truncf %46 : vector<128x128xf32> to vector<128x128xbf16>
    %c7 = arith.constant 7 : index
    %c0_33 = arith.constant 0 : index
    %c0_34 = arith.constant 0 : index
    %48 = vector.load %arg3[%c7, %c0_33, %c0_34] : memref<9x128x128xbf16, #tpu.memory_space<vmem>>, vector<1x128x128xbf16>
    %49 = vector.shape_cast %48 : vector<1x128x128xbf16> to vector<128x128xbf16>
    %cst_35 = arith.constant dense<0.000000e+00> : vector<128x128xf32>
    %50 = tpu.matmul %47, %49, %cst_35 {dimension_numbers = #tpu.dot_dimension_numbers<[1], [0], [0], [1], [0, 0, 1, 1], [], []>} : vector<128x128xbf16>, vector<128x128xbf16>, vector<128x128xf32> -> vector<128x128xf32>
    %51 = arith.addf %45, %50 : vector<128x128xf32>
    %c30 = arith.constant 30 : index
    %c0_36 = arith.constant 0 : index
    %52 = vector.load %arg7[%c30, %c0_36] : memref<160x128xf32, #tpu.memory_space<vmem>>, vector<128x128xf32>
    %53 = arith.truncf %52 : vector<128x128xf32> to vector<128x128xbf16>
    %c8 = arith.constant 8 : index
    %c0_37 = arith.constant 0 : index
    %c0_38 = arith.constant 0 : index
    %54 = vector.load %arg3[%c8, %c0_37, %c0_38] : memref<9x128x128xbf16, #tpu.memory_space<vmem>>, vector<1x128x128xbf16>
    %55 = vector.shape_cast %54 : vector<1x128x128xbf16> to vector<128x128xbf16>
    %cst_39 = arith.constant dense<0.000000e+00> : vector<128x128xf32>
    %56 = tpu.matmul %53, %55, %cst_39 {dimension_numbers = #tpu.dot_dimension_numbers<[1], [0], [0], [1], [0, 0, 1, 1], [], []>} : vector<128x128xbf16>, vector<128x128xbf16>, vector<128x128xf32> -> vector<128x128xf32>
    %57 = arith.addf %51, %56 : vector<128x128xf32>
    %c0_40 = arith.constant 0 : index
    %c0_41 = arith.constant 0 : index
    %58 = vector.load %arg4[%c0_40, %c0_41] : memref<1x128xf32, #tpu.memory_space<vmem>>, vector<1x128xf32>
    %59 = vector.broadcast %58 : vector<1x128xf32> to vector<128x128xf32>
    %60 = arith.mulf %57, %59 : vector<128x128xf32>
    %c0_42 = arith.constant 0 : index
    %c0_43 = arith.constant 0 : index
    %61 = vector.load %arg5[%c0_42, %c0_43] : memref<1x128xf32, #tpu.memory_space<vmem>>, vector<1x128xf32>
    %62 = vector.broadcast %61 : vector<1x128xf32> to vector<128x128xf32>
    %63 = arith.addf %60, %62 : vector<128x128xf32>
    %64 = arith.truncf %63 : vector<128x128xf32> to vector<128x128xbf16>
    %c0_44 = arith.constant 0 : index
    %c0_45 = arith.constant 0 : index
    %65 = vector.load %arg6[%c0_44, %c0_45] : memref<128x128xbf16, #tpu.memory_space<vmem>>, vector<128x128xbf16>
    tpu.vector_store %arg6[%c0_44, %c0_45], %64 {strides = array<i32>} : memref<128x128xbf16, #tpu.memory_space<vmem>>, vector<128x128xbf16>,
    return
  }
  func.func @transform_1(%arg0: i32, %arg1: i32) -> (i32, i32, i32) {
    %c0_i32 = arith.constant 0 : i32
    %c0_i32_0 = arith.constant 0 : i32
    %c0_i32_1 = arith.constant 0 : i32
    return %c0_i32, %c0_i32_0, %arg1 : i32, i32, i32
  }
  func.func @transform_2(%arg0: i32, %arg1: i32) -> (i32, i32) {
    %c0_i32 = arith.constant 0 : i32
    %c0_i32_0 = arith.constant 0 : i32
    return %c0_i32, %arg1 : i32, i32
  }
  func.func @transform_3(%arg0: i32, %arg1: i32) -> (i32, i32) {
    %c0_i32 = arith.constant 0 : i32
    %c0_i32_0 = arith.constant 0 : i32
    return %c0_i32, %arg1 : i32, i32
  }
  func.func @transform_4(%arg0: i32, %arg1: i32) -> (i32, i32) {
    %c0_i32 = arith.constant 0 : i32
    return %arg0, %arg1 : i32, i32
  }
}

</mosaic_0001>

<llo_original>
// kernel: tpu_custom_call.1
$region0: #{tpu_custom_call.1}
  #allocation0 [shape = 'u32[]', space=smem, size = 0x4, offset = 0x4, fixed_abs, tag = 'smem constant byte address 0x4 - core index']
  #allocation1 [shape = 'u32[72,128]{1,0:T(1,128)}', space=vmem, size = 0x9000, scoped, tag = 'internal scratch']
  #allocation2 [shape = 'f32[160,128]{1,0:T(8,128)}', space=vmem, size = 0x14000, scoped, tag = 'scratch operand']
  #allocation3 [shape = 's32[1]{0}', space=sflag, size = 0x4, scoped, tag = 'scratch operand']
  #allocation8 [shape = 's32[]', space=sflag, size = 0x4, offset = 0, fixed_abs, tag = 'sflag constant byte address 0x0 - dummy sync flag']
  #allocation9 [shape = 's32[]', space=sflag, size = 0x4, offset = 0, fixed_abs, tag = 'sflag constant byte address 0x0 - dummy sync flag']
  #allocation10 [shape = 'u32[]', space=smem, size = 0x4, offset = 0x44, fixed_abs, tag = 'smem constant byte address 0x44 - assertion arg 0']
  #allocation11 [shape = 'u32[]', space=smem, size = 0x4, offset = 0x48, fixed_abs, tag = 'smem constant byte address 0x48 - assertion arg 1']
  %s0 = inlined_call_operand.hbm [shape: f32[544,128], index: 0, kind: input, shape index: {}]
  %s1 = inlined_call_operand.hbm [shape: bf16[9,128,128], index: 1, kind: input, shape index: {}]
  %s2 = inlined_call_operand.vmem [shape: f32[1,128], index: 2, kind: input, shape index: {}]
  %s3 = inlined_call_operand.vmem [shape: f32[1,128], index: 3, kind: input, shape index: {}]
  %s4 = inlined_call_operand.hbm [shape: bf16[512,128], index: 4, kind: output, shape index: {}]
  %s5 = sld [smem:[#allocation0]]
  $region57: #{tpu_custom_call.1} parent=0
    _
  %s7 = ssub.s32 1, %s5
  %s8 = scalar_select 0, %s7, %s5
  $region1: #{tpu_custom_call.1} parent=0
    #allocation4 [shape = 'u8[294912]{0}', space=vmem, size = 0x48000, scoped, tag = 'input window, operand 1, single buffered']
    #allocation5 [shape = 's32[2]{0}', space=sflag, size = 0x8, scoped, tag = 'scoped memory for tpu_custom_call.1']
    #allocation6 [shape = 's32[2]{0}', space=sflag, size = 0x8, scoped, tag = 'scoped memory for tpu_custom_call.1']
    #allocation7 [shape = 'u8[65536]{0}', space=vmem, size = 0x10000, scoped, tag = 'output window, operand 0']
    %9 = vsyncpa [#allocation5], 0
    %10 = vsyncpa [#allocation6], 0
    %s11 = scalar_lea.sflag [#allocation6], 1
    %12 = vsyncpa %s11, 0
    loop: start=0, step=1, limit=6
    $region2: #{tpu_custom_call.1} parent=1 // loop_pre_header
      _
    $region3: #{tpu_custom_call.1} parent=1 // loop_header
      %s14 = sphi 0, %s18
      %p15 = scmp.ge.s32.totalorder %s14, 6
      %s21 = sphi 0, %s33
      %s22 = sphi 0, %s29
      %s23 = sphi 0, %s21
      %s24 = sphi 0, %s22
      %s25 = sphi 0, %s23
      %s26 = sphi 0, %s24
      %s36 = sphi 0, %s38
      %s39 = sphi 0, %s36
      %s40 = sphi 0, %s39
      %s56 = sphi 0, %s40
      %s62 = sphi 0, %s64
      %s65 = sphi 0, %s62
      %s66 = sphi 0, %s65
      %s82 = sphi 0, %s66
      %s88 = sphi 0, %s90
      %s91 = sphi 0, %s88
      %s92 = sphi 0, %s91
      %s108 = sphi 0, %s92
      %s116 = sphi 0, %s118
      %s119 = sphi 0, %s116
      %s120 = sphi 0, %s119
      %s136 = sphi 0, %s120
    $region4: #{tpu_custom_call.1} parent=1 // loop_header_branch
      %17 = sbr.rel (%p15) target = $region8
    $region5: #{tpu_custom_call.1} parent=1 // loop_body
      %s19 = ssub.s32 %s14, 1
      %s20 = ssub.s32 %s14, 2
      %s27 = sadd.s32 1, %s22
      %p28 = scmp.ge.s32.totalorder %s27, 1
      %s29 = scalar_select %p28, 0, %s27
      %s30 = sadd.s32 1, %s21
      %s31 = scalar_select %p28, %s30, %s21
      %p32 = scmp.ge.s32.totalorder %s31, 4
      %s33 = scalar_select %p32, 0, %s31
      %s34 = ssub.s32 %s22, %s29
      %p35 = scmp.eq.s32.totalorder %s34, 0
      %s37 = sadd.s32 %s36, 1
      %s38 = scalar_select %p35, %s36, %s37
      %p41 = pneg %p35
      %p42 = scmp.eq.s32.totalorder %s14, 3
      %p43 = por %p41, %p42
      %p44 = scmp.ne.s32.totalorder %s36, %s39
      %p45 = scmp.eq.s32.totalorder %s14, 0
      %p46 = por %p44, %p45
      %p47 = scmp.ne.s32.totalorder %s36, %s39
      %p48 = scmp.eq.s32.totalorder %s19, 3
      %p49 = por %p47, %p48
      %p50 = scmp.ne.s32.totalorder %s39, %s40
      %p51 = scmp.eq.s32.totalorder %s19, 0
      %p52 = por %p50, %p51
      %p53 = scmp.ne.s32.totalorder %s39, %s40
      %p54 = scmp.eq.s32.totalorder %s20, 3
      %p55 = por %p53, %p54
      %p57 = scmp.ne.s32.totalorder %s40, %s56
      %p58 = scmp.eq.s32.totalorder %s20, 0
      %p59 = por %p57, %p58
      %s60 = ssub.s32 %s22, %s29
      %p61 = scmp.eq.s32.totalorder %s60, 0
      %s63 = sadd.s32 %s62, 1
      %s64 = scalar_select %p61, %s62, %s63
      %p67 = pneg %p61
      %p68 = scmp.eq.s32.totalorder %s14, 3
      %p69 = por %p67, %p68
      %p70 = scmp.ne.s32.totalorder %s62, %s65
      %p71 = scmp.eq.s32.totalorder %s14, 0
      %p72 = por %p70, %p71
      %p73 = scmp.ne.s32.totalorder %s62, %s65
      %p74 = scmp.eq.s32.totalorder %s19, 3
      %p75 = por %p73, %p74
      %p76 = scmp.ne.s32.totalorder %s65, %s66
      %p77 = scmp.eq.s32.totalorder %s19, 0
      %p78 = por %p76, %p77
      %p79 = scmp.ne.s32.totalorder %s65, %s66
      %p80 = scmp.eq.s32.totalorder %s20, 3
      %p81 = por %p79, %p80
      %p83 = scmp.ne.s32.totalorder %s66, %s82
      %p84 = scmp.eq.s32.totalorder %s20, 0
      %p85 = por %p83, %p84
      %s86 = ssub.s32 %s22, %s29
      %p87 = scmp.eq.s32.totalorder %s86, 0
      %s89 = sadd.s32 %s88, 1
      %s90 = scalar_select %p87, %s88, %s89
      %p93 = pneg %p87
      %p94 = scmp.eq.s32.totalorder %s14, 3
      %p95 = por %p93, %p94
      %p96 = scmp.ne.s32.totalorder %s88, %s91
      %p97 = scmp.eq.s32.totalorder %s14, 0
      %p98 = por %p96, %p97
      %p99 = scmp.ne.s32.totalorder %s88, %s91
      %p100 = scmp.eq.s32.totalorder %s19, 3
      %p101 = por %p99, %p100
      %p102 = scmp.ne.s32.totalorder %s91, %s92
      %p103 = scmp.eq.s32.totalorder %s19, 0
      %p104 = por %p102, %p103
      %p105 = scmp.ne.s32.totalorder %s91, %s92
      %p106 = scmp.eq.s32.totalorder %s20, 3
      %p107 = por %p105, %p106
      %p109 = scmp.ne.s32.totalorder %s92, %s108
      %p110 = scmp.eq.s32.totalorder %s20, 0
      %p111 = por %p109, %p110
      %s112 = ssub.s32 %s21, %s33
      %s113 = ssub.s32 %s22, %s29
      %s114 = sor.u32 %s112, %s113
      %p115 = scmp.eq.s32.totalorder %s114, 0
      %s117 = sadd.s32 %s116, 1
      %s118 = scalar_select %p115, %s116, %s117
      %p121 = pneg %p115
      %p122 = scmp.eq.s32.totalorder %s14, 3
      %p123 = por %p121, %p122
      %p124 = scmp.ne.s32.totalorder %s116, %s119
      %p125 = scmp.eq.s32.totalorder %s14, 0
      %p126 = por %p124, %p125
      %p127 = scmp.ne.s32.totalorder %s116, %s119
      %p128 = scmp.eq.s32.totalorder %s19, 3
      %p129 = por %p127, %p128
      %p130 = scmp.ne.s32.totalorder %s119, %s120
      %p131 = scmp.eq.s32.totalorder %s19, 0
      %p132 = por %p130, %p131
      %p133 = scmp.ne.s32.totalorder %s119, %s120
      %p134 = scmp.eq.s32.totalorder %s20, 3
      %p135 = por %p133, %p134
      %p137 = scmp.ne.s32.totalorder %s120, %s136
      %p138 = scmp.eq.s32.totalorder %s20, 0
      %p139 = por %p137, %p138
      %p140 = scmp.le.s32.totalorder 1, %s14
      %p141 = scmp.lt.s32.totalorder %s14, 5
      %p142 = pnand %p140, %p141
      %p143 = pneg %p142
      // Predicated region
      $region9: #{tpu_custom_call.1} parent=5 // pred_check
        _
      $region10: #{tpu_custom_call.1} parent=5 // pred_check_branch
        %145 = sbr.rel (%p142) target = $region12
      $region11: #{tpu_custom_call.1} parent=5 // pred_region
        %s146 = ssub.s32 %s14, 1
        // Predicated region
        $region13: #{tpu_custom_call.1} parent=11 // pred_check
          %p147 = pneg %p52
        $region14: #{tpu_custom_call.1} parent=11 // pred_check_branch
          %149 = sbr.rel (%p147) target = $region16
        $region15: #{tpu_custom_call.1} parent=11 // pred_region
          %151 = vsyncadd [#allocation5], 0
          %s152 = smul.addr %s24, 4
          %s153 = scalar_lea.hbm %s1, %s152
          %s154 = sshll.u32 %s153, 4
          %s155 = int_to_ptr.hbm [resolvable:$true] %s154
          %s156 = sshll.u32 [#allocation4], 4
          %s157 = int_to_ptr.vmem [resolvable:$true] %s156
          %162 = dma.hbm_to_vmem [thread:$0]  %s155, 9216, %s157, [#allocation5], 64, 64, 4
        $region16: #{tpu_custom_call.1} parent=11 // pred_fallthru
          _
        // Predicated region
        $region17: #{tpu_custom_call.1} parent=11 // pred_check
          %p163 = pneg %p78
        $region18: #{tpu_custom_call.1} parent=11 // pred_check_branch
          %165 = sbr.rel (%p163) target = $region20
        $region19: #{tpu_custom_call.1} parent=11 // pred_region
          %p166 = scmp.lt.s32.totalorder %s24, 0
          %s167 = scalar_select %p166, %s24, 0
          %s168 = scalar_lea.vmem %s2, %s167
        $region20: #{tpu_custom_call.1} parent=11 // pred_fallthru
          _
        // Predicated region
        $region21: #{tpu_custom_call.1} parent=11 // pred_check
          %p169 = pneg %p104
        $region22: #{tpu_custom_call.1} parent=11 // pred_check_branch
          %171 = sbr.rel (%p169) target = $region24
        $region23: #{tpu_custom_call.1} parent=11 // pred_region
          %p172 = scmp.lt.s32.totalorder %s24, 0
          %s173 = scalar_select %p172, %s24, 0
          %s174 = scalar_lea.vmem %s3, %s173
        $region24: #{tpu_custom_call.1} parent=11 // pred_fallthru
          _
      $region12: #{tpu_custom_call.1} parent=5 // pred_fallthru
        _
      %p175 = scmp.lt.s32.totalorder %s14, 4
      // Predicated region
      $region25: #{tpu_custom_call.1} parent=5 // pred_check
        %p176 = pneg %p175
      $region26: #{tpu_custom_call.1} parent=5 // pred_check_branch
        %178 = sbr.rel (%p176) target = $region28
      $region27: #{tpu_custom_call.1} parent=5 // pred_region
        _
      $region28: #{tpu_custom_call.1} parent=5 // pred_fallthru
        _
      %p179 = scmp.le.s32.totalorder 1, %s14
      %p180 = scmp.lt.s32.totalorder %s14, 5
      %p181 = pnand %p179, %p180
      %p182 = pneg %p181
      // Predicated region
      $region29: #{tpu_custom_call.1} parent=5 // pred_check
        _
      $region30: #{tpu_custom_call.1} parent=5 // pred_check_branch
        %184 = sbr.rel (%p181) target = $region32
      $region31: #{tpu_custom_call.1} parent=5 // pred_region
        %s185 = ssub.s32 %s14, 1
        // Predicated region
        $region33: #{tpu_custom_call.1} parent=31 // pred_check
          %p186 = pneg %p52
        $region34: #{tpu_custom_call.1} parent=31 // pred_check_branch
          %188 = sbr.rel (%p186) target = $region36
        $region35: #{tpu_custom_call.1} parent=31 // pred_region
          %190 = dma.done [#allocation5], 9216
        $region36: #{tpu_custom_call.1} parent=31 // pred_fallthru
          _
        %p191 = pneg %p52
        %p192 = pneg %p49
        %p193 = scmp.lt.s32.totalorder %s24, 0
        %s194 = scalar_select %p193, %s24, 0
        %s195 = scalar_lea.vmem %s2, %s194
        %p196 = pneg %p78
        %p197 = pneg %p75
        %p198 = scmp.lt.s32.totalorder %s24, 0
        %s199 = scalar_select %p198, %s24, 0
        %s200 = scalar_lea.vmem %s3, %s199
        %p201 = pneg %p104
        %p202 = pneg %p101
        %p203 = pneg %p132
        %p204 = pneg %p129
        %s205 = sand.u32 %s119, 1
        %s206 = scalar_lea.sflag [#allocation6], %s205
        %s207 = sand.u32 %s119, 1
        %s208 = smul.addr %s207, 64
        %s209 = scalar_lea.vmem [#allocation7], %s208
        %p210 = scmp.lt.s32.totalorder %s24, 0
        %s211 = scalar_select %p210, %s24, 0
        %s212 = scalar_lea.vmem %s2, %s211
        %p213 = scmp.lt.s32.totalorder %s24, 0
        %s214 = scalar_select %p213, %s24, 0
        %s215 = scalar_lea.vmem %s3, %s214
        %s216 = smul.u32 16, %s23
        %p217 = scmp.eq.s32.totalorder %s24, 0
        // Predicated region
        $region37: #{tpu_custom_call.1} parent=31 // pred_check
          %p218 = pneg %p217
        $region38: #{tpu_custom_call.1} parent=31 // pred_check_branch
          %220 = sbr.rel (%p218) target = $region40
        $region39: #{tpu_custom_call.1} parent=31 // pred_region
          %s221 = smul.u32 %s23, 128
          %s222 = scalar_lea.hbm %s0, %s221
          // Predicated region
          $region41: #{tpu_custom_call.1} parent=39 // pred_check
            _
          $region42: #{tpu_custom_call.1} parent=39 // pred_check_branch
            %224 = sbr.rel target = $region44
          $region43: #{tpu_custom_call.1} parent=39 // pred_region
            %225 = sst [smem:[#allocation10]] [#allocation9]
            %226 = sst [smem:[#allocation11]] [#allocation8]
          $region44: #{tpu_custom_call.1} parent=39 // pred_fallthru
            _
          %228 = shalt.err (0)
          %s230 = sshll.u32 %s222, 4
          %s231 = int_to_ptr.hbm [resolvable:$true] %s230
          %s232 = sshll.u32 [#allocation2], 4
          %s233 = int_to_ptr.vmem [resolvable:$true] %s232
          %235 = dma.hbm_to_vmem [thread:$0]  %s231, 2560, %s233, [#allocation3]
          %s236 = smul.u32 160, 1
          %s237 = sshll.u32 %s236, 4
          %238 = dma.done [#allocation3], %s237
        $region40: #{tpu_custom_call.1} parent=31 // pred_fallthru
          _
        %v239 = vld [vmem:[#allocation2] sm:$0xff]
        %v240 = vld [vmem:[#allocation2 + $0x8] sm:$0xff]
        %v241 = vld [vmem:[#allocation2 + $0x10] sm:$0xff]
        %v242 = vld [vmem:[#allocation2 + $0x18] sm:$0xff]
        %v243 = vld [vmem:[#allocation2 + $0x20] sm:$0xff]
        %v244 = vld [vmem:[#allocation2 + $0x28] sm:$0xff]
        %v245 = vld [vmem:[#allocation2 + $0x30] sm:$0xff]
        %v246 = vld [vmem:[#allocation2 + $0x38] sm:$0xff]
        %v247 = vld [vmem:[#allocation2 + $0x40] sm:$0xff]
        %v248 = vld [vmem:[#allocation2 + $0x48] sm:$0xff]
        %v249 = vld [vmem:[#allocation2 + $0x50] sm:$0xff]
        %v250 = vld [vmem:[#allocation2 + $0x58] sm:$0xff]
        %v251 = vld [vmem:[#allocation2 + $0x60] sm:$0xff]
        %v252 = vld [vmem:[#allocation2 + $0x68] sm:$0xff]
        %v253 = vld [vmem:[#allocation2 + $0x70] sm:$0xff]
        %v254 = vld [vmem:[#allocation2 + $0x78] sm:$0xff]
        %v255 = vpack.c.bf16 %v240, %v239
        %v256 = vpack.c.bf16 %v242, %v241
        %v257 = vpack.c.bf16 %v244, %v243
        %v258 = vpack.c.bf16 %v246, %v245
        %v259 = vpack.c.bf16 %v248, %v247
        %v260 = vpack.c.bf16 %v250, %v249
        %v261 = vpack.c.bf16 %v252, %v251
        %v262 = vpack.c.bf16 %v254, %v253
        %v263 = vld [vmem:[#allocation4] sm:$0xf]
        %v264 = vld [vmem:[#allocation4 + $0x4] sm:$0xf]
        %v265 = vld [vmem:[#allocation4 + $0x8] sm:$0xf]
        %v266 = vld [vmem:[#allocation4 + $0xc] sm:$0xf]
        %v267 = vld [vmem:[#allocation4 + $0x10] sm:$0xf]
        %v268 = vld [vmem:[#allocation4 + $0x14] sm:$0xf]
        %v269 = vld [vmem:[#allocation4 + $0x18] sm:$0xf]
        %v270 = vld [vmem:[#allocation4 + $0x1c] sm:$0xf]
        %v271 = vld [vmem:[#allocation4 + $0x20] sm:$0xf]
        %v272 = vld [vmem:[#allocation4 + $0x24] sm:$0xf]
        %v273 = vld [vmem:[#allocation4 + $0x28] sm:$0xf]
        %v274 = vld [vmem:[#allocation4 + $0x2c] sm:$0xf]
        %v275 = vld [vmem:[#allocation4 + $0x30] sm:$0xf]
        %v276 = vld [vmem:[#allocation4 + $0x34] sm:$0xf]
        %v277 = vld [vmem:[#allocation4 + $0x38] sm:$0xf]
        %v278 = vld [vmem:[#allocation4 + $0x3c] sm:$0xf]
        %v279 = vld [vmem:[#allocation2 + $0x1] sm:$0xff]
        %v280 = vld [vmem:[#allocation2 + $0x9] sm:$0xff]
        %v281 = vld [vmem:[#allocation2 + $0x11] sm:$0xff]
        %v282 = vld [vmem:[#allocation2 + $0x19] sm:$0xff]
        %v283 = vld [vmem:[#allocation2 + $0x21] sm:$0xff]
        %v284 = vld [vmem:[#allocation2 + $0x29] sm:$0xff]
        %v285 = vld [vmem:[#allocation2 + $0x31] sm:$0xff]
        %v286 = vld [vmem:[#allocation2 + $0x39] sm:$0xff]
        %v287 = vld [vmem:[#allocation2 + $0x41] sm:$0xff]
        %v288 = vld [vmem:[#allocation2 + $0x49] sm:$0xff]
        %v289 = vld [vmem:[#allocation2 + $0x51] sm:$0xff]
        %v290 = vld [vmem:[#allocation2 + $0x59] sm:$0xff]
        %v291 = vld [vmem:[#allocation2 + $0x61] sm:$0xff]
        %v292 = vld [vmem:[#allocation2 + $0x69] sm:$0xff]
        %v293 = vld [vmem:[#allocation2 + $0x71] sm:$0xff]
        %v294 = vld [vmem:[#allocation2 + $0x79] sm:$0xff]
        %v295 = vpack.c.bf16 %v280, %v279
        %v296 = vpack.c.bf16 %v282, %v281
        %v297 = vpack.c.bf16 %v284, %v283
        %v298 = vpack.c.bf16 %v286, %v285
        %v299 = vpack.c.bf16 %v288, %v287
        %v300 = vpack.c.bf16 %v290, %v289
        %v301 = vpack.c.bf16 %v292, %v291
        %v302 = vpack.c.bf16 %v294, %v293
        %s303 = scalar_lea.vmem [#allocation4], 64
        %v304 = vld [vmem:[%s303] sm:$0xf]
        %v305 = vld [vmem:[%s303 + $0x4] sm:$0xf]
        %v306 = vld [vmem:[%s303 + $0x8] sm:$0xf]
        %v307 = vld [vmem:[%s303 + $0xc] sm:$0xf]
        %v308 = vld [vmem:[%s303 + $0x10] sm:$0xf]
        %v309 = vld [vmem:[%s303 + $0x14] sm:$0xf]
        %v310 = vld [vmem:[%s303 + $0x18] sm:$0xf]
        %v311 = vld [vmem:[%s303 + $0x1c] sm:$0xf]
        %v312 = vld [vmem:[%s303 + $0x20] sm:$0xf]
        %v313 = vld [vmem:[%s303 + $0x24] sm:$0xf]
        %v314 = vld [vmem:[%s303 + $0x28] sm:$0xf]
        %v315 = vld [vmem:[%s303 + $0x2c] sm:$0xf]
        %v316 = vld [vmem:[%s303 + $0x30] sm:$0xf]
        %v317 = vld [vmem:[%s303 + $0x34] sm:$0xf]
        %v318 = vld [vmem:[%s303 + $0x38] sm:$0xf]
        %v319 = vld [vmem:[%s303 + $0x3c] sm:$0xf]
        %v336 = vunpack.c.l.b16 %v304
        %v337 = vunpack.c.l.b16 %v305
        %v338 = vunpack.c.l.b16 %v306
        %v339 = vunpack.c.l.b16 %v307
        %v340 = vunpack.c.l.b16 %v308
        %v341 = vunpack.c.l.b16 %v309
        %v342 = vunpack.c.l.b16 %v310
        %v343 = vunpack.c.l.b16 %v311
        %v344 = vunpack.c.l.b16 %v312
        %v345 = vunpack.c.l.b16 %v313
        %v346 = vunpack.c.l.b16 %v314
        %v347 = vunpack.c.l.b16 %v315
        %v348 = vunpack.c.l.b16 %v316
        %v349 = vunpack.c.l.b16 %v317
        %v350 = vunpack.c.l.b16 %v318
        %v351 = vunpack.c.l.b16 %v319
        %v352 = vpack.c.b16 %v337, %v336
        %v353 = vpack.c.b16 %v339, %v338
        %v354 = vpack.c.b16 %v341, %v340
        %v355 = vpack.c.b16 %v343, %v342
        %v356 = vpack.c.b16 %v345, %v344
        %v357 = vpack.c.b16 %v347, %v346
        %v358 = vpack.c.b16 %v349, %v348
        %v359 = vpack.c.b16 %v351, %v350
        %368 = vmatpush.bf16.msra.mxu0 %v359
        %369 = vmatpush.bf16.msra.mxu0 %v358
        %370 = vmatpush.bf16.msra.mxu0 %v357
        %371 = vmatpush.bf16.msra.mxu0 %v356
        %372 = vmatpush.bf16.msra.mxu0 %v355
        %373 = vmatpush.bf16.msra.mxu0 %v354
        %374 = vmatpush.bf16.msra.mxu0 %v353
        %375 = vmatpush.bf16.msra.mxu0 %v352
        %376 = vmatmul.bf16.gmra.mxu0 %v295
        %v377 = vpop.f32.mrf.mxu0
        %v378 = vadd.f32 0.0, %v377
        %v379 = vpop.f32.mrf.mxu0
        %v380 = vadd.f32 0.0, %v379
        %381 = vmatmul.bf16.gmra.mxu0 %v296
        %v382 = vpop.f32.mrf.mxu0
        %v383 = vadd.f32 0.0, %v382
        %v384 = vpop.f32.mrf.mxu0
        %v385 = vadd.f32 0.0, %v384
        %386 = vmatmul.bf16.gmra.mxu0 %v297
        %v387 = vpop.f32.mrf.mxu0
        %v388 = vadd.f32 0.0, %v387
        %v389 = vpop.f32.mrf.mxu0
        %v390 = vadd.f32 0.0, %v389
        %391 = vmatmul.bf16.gmra.mxu0 %v298
        %v392 = vpop.f32.mrf.mxu0
        %v393 = vadd.f32 0.0, %v392
        %v394 = vpop.f32.mrf.mxu0
        %v395 = vadd.f32 0.0, %v394
        %396 = vmatmul.bf16.gmra.mxu0 %v299
        %v397 = vpop.f32.mrf.mxu0
        %v398 = vadd.f32 0.0, %v397
        %v399 = vpop.f32.mrf.mxu0
        %v400 = vadd.f32 0.0, %v399
        %401 = vmatmul.bf16.gmra.mxu0 %v300
        %v402 = vpop.f32.mrf.mxu0
        %v403 = vadd.f32 0.0, %v402
        %v404 = vpop.f32.mrf.mxu0
        %v405 = vadd.f32 0.0, %v404
        %406 = vmatmul.bf16.gmra.mxu0 %v301
        %v407 = vpop.f32.mrf.mxu0
        %v408 = vadd.f32 0.0, %v407
        %v409 = vpop.f32.mrf.mxu0
        %v410 = vadd.f32 0.0, %v409
        %411 = vmatmul.bf16.gmra.mxu0 %v302
        %v412 = vpop.f32.mrf.mxu0
        %v413 = vadd.f32 0.0, %v412
        %v414 = vpop.f32.mrf.mxu0
        %v415 = vadd.f32 0.0, %v414
        %416 = vdwg.mxu0
        %v433 = vunpack.c.l.b16 %v263
        %v434 = vunpack.c.l.b16 %v264
        %v435 = vunpack.c.l.b16 %v265
        %v436 = vunpack.c.l.b16 %v266
        %v437 = vunpack.c.l.b16 %v267
        %v438 = vunpack.c.l.b16 %v268
        %v439 = vunpack.c.l.b16 %v269
        %v440 = vunpack.c.l.b16 %v270
        %v441 = vunpack.c.l.b16 %v271
        %v442 = vunpack.c.l.b16 %v272
        %v443 = vunpack.c.l.b16 %v273
        %v444 = vunpack.c.l.b16 %v274
        %v445 = vunpack.c.l.b16 %v275
        %v446 = vunpack.c.l.b16 %v276
        %v447 = vunpack.c.l.b16 %v277
        %v448 = vunpack.c.l.b16 %v278
        %v449 = vpack.c.b16 %v434, %v433
        %v450 = vpack.c.b16 %v436, %v435
        %v451 = vpack.c.b16 %v438, %v437
        %v452 = vpack.c.b16 %v440, %v439
        %v453 = vpack.c.b16 %v442, %v441
        %v454 = vpack.c.b16 %v444, %v443
        %v455 = vpack.c.b16 %v446, %v445
        %v456 = vpack.c.b16 %v448, %v447
        %465 = vmatpush.bf16.msra.mxu0 %v456
        %466 = vmatpush.bf16.msra.mxu0 %v455
        %467 = vmatpush.bf16.msra.mxu0 %v454
        %468 = vmatpush.bf16.msra.mxu0 %v453
        %469 = vmatpush.bf16.msra.mxu0 %v452
        %470 = vmatpush.bf16.msra.mxu0 %v451
        %471 = vmatpush.bf16.msra.mxu0 %v450
        %472 = vmatpush.bf16.msra.mxu0 %v449
        %473 = vmatmul.bf16.gmra.mxu0 %v255
        %v474 = vpop.f32.mrf.mxu0
        %v475 = vadd.f32 %v378, %v474
        %v476 = vpop.f32.mrf.mxu0
        %v477 = vadd.f32 %v380, %v476
        %478 = vmatmul.bf16.gmra.mxu0 %v256
        %v479 = vpop.f32.mrf.mxu0
        %v480 = vadd.f32 %v383, %v479
        %v481 = vpop.f32.mrf.mxu0
        %v482 = vadd.f32 %v385, %v481
        %483 = vmatmul.bf16.gmra.mxu0 %v257
        %v484 = vpop.f32.mrf.mxu0
        %v485 = vadd.f32 %v388, %v484
        %v486 = vpop.f32.mrf.mxu0
        %v487 = vadd.f32 %v390, %v486
        %488 = vmatmul.bf16.gmra.mxu0 %v258
        %v489 = vpop.f32.mrf.mxu0
        %v490 = vadd.f32 %v393, %v489
        %v491 = vpop.f32.mrf.mxu0
        %v492 = vadd.f32 %v395, %v491
        %493 = vmatmul.bf16.gmra.mxu0 %v259
        %v494 = vpop.f32.mrf.mxu0
        %v495 = vadd.f32 %v398, %v494
        %v496 = vpop.f32.mrf.mxu0
        %v497 = vadd.f32 %v400, %v496
        %498 = vmatmul.bf16.gmra.mxu0 %v260
        %v499 = vpop.f32.mrf.mxu0
        %v500 = vadd.f32 %v403, %v499
        %v501 = vpop.f32.mrf.mxu0
        %v502 = vadd.f32 %v405, %v501
        %503 = vmatmul.bf16.gmra.mxu0 %v261
        %v504 = vpop.f32.mrf.mxu0
        %v505 = vadd.f32 %v408, %v504
        %v506 = vpop.f32.mrf.mxu0
        %v507 = vadd.f32 %v410, %v506
        %508 = vmatmul.bf16.gmra.mxu0 %v262
        %v509 = vpop.f32.mrf.mxu0
        %v510 = vadd.f32 %v413, %v509
        %v511 = vpop.f32.mrf.mxu0
        %v512 = vadd.f32 %v415, %v511
        %513 = vdwg.mxu0
        %v514 = vld [vmem:[#allocation2 + $0x2] sm:$0xff]
        %v515 = vld [vmem:[#allocation2 + $0xa] sm:$0xff]
        %v516 = vld [vmem:[#allocation2 + $0x12] sm:$0xff]
        %v517 = vld [vmem:[#allocation2 + $0x1a] sm:$0xff]
        %v518 = vld [vmem:[#allocation2 + $0x22] sm:$0xff]
        %v519 = vld [vmem:[#allocation2 + $0x2a] sm:$0xff]
        %v520 = vld [vmem:[#allocation2 + $0x32] sm:$0xff]
        %v521 = vld [vmem:[#allocation2 + $0x3a] sm:$0xff]
        %v522 = vld [vmem:[#allocation2 + $0x42] sm:$0xff]
        %v523 = vld [vmem:[#allocation2 + $0x4a] sm:$0xff]
        %v524 = vld [vmem:[#allocation2 + $0x52] sm:$0xff]
        %v525 = vld [vmem:[#allocation2 + $0x5a] sm:$0xff]
        %v526 = vld [vmem:[#allocation2 + $0x62] sm:$0xff]
        %v527 = vld [vmem:[#allocation2 + $0x6a] sm:$0xff]
        %v528 = vld [vmem:[#allocation2 + $0x72] sm:$0xff]
        %v529 = vld [vmem:[#allocation2 + $0x7a] sm:$0xff]
        %v530 = vpack.c.bf16 %v515, %v514
        %v531 = vpack.c.bf16 %v517, %v516
        %v532 = vpack.c.bf16 %v519, %v518
        %v533 = vpack.c.bf16 %v521, %v520
        %v534 = vpack.c.bf16 %v523, %v522
        %v535 = vpack.c.bf16 %v525, %v524
        %v536 = vpack.c.bf16 %v527, %v526
        %v537 = vpack.c.bf16 %v529, %v528
        %s538 = scalar_lea.vmem [#allocation4], 128
        %v539 = vld [vmem:[%s538] sm:$0xf]
        %v540 = vld [vmem:[%s538 + $0x4] sm:$0xf]
        %v541 = vld [vmem:[%s538 + $0x8] sm:$0xf]
        %v542 = vld [vmem:[%s538 + $0xc] sm:$0xf]
        %v543 = vld [vmem:[%s538 + $0x10] sm:$0xf]
        %v544 = vld [vmem:[%s538 + $0x14] sm:$0xf]
        %v545 = vld [vmem:[%s538 + $0x18] sm:$0xf]
        %v546 = vld [vmem:[%s538 + $0x1c] sm:$0xf]
        %v547 = vld [vmem:[%s538 + $0x20] sm:$0xf]
        %v548 = vld [vmem:[%s538 + $0x24] sm:$0xf]
        %v549 = vld [vmem:[%s538 + $0x28] sm:$0xf]
        %v550 = vld [vmem:[%s538 + $0x2c] sm:$0xf]
        %v551 = vld [vmem:[%s538 + $0x30] sm:$0xf]
        %v552 = vld [vmem:[%s538 + $0x34] sm:$0xf]
        %v553 = vld [vmem:[%s538 + $0x38] sm:$0xf]
        %v554 = vld [vmem:[%s538 + $0x3c] sm:$0xf]
        %v571 = vunpack.c.l.b16 %v539
        %v572 = vunpack.c.l.b16 %v540
        %v573 = vunpack.c.l.b16 %v541
        %v574 = vunpack.c.l.b16 %v542
        %v575 = vunpack.c.l.b16 %v543
        %v576 = vunpack.c.l.b16 %v544
        %v577 = vunpack.c.l.b16 %v545
        %v578 = vunpack.c.l.b16 %v546
        %v579 = vunpack.c.l.b16 %v547
        %v580 = vunpack.c.l.b16 %v548
        %v581 = vunpack.c.l.b16 %v549
        %v582 = vunpack.c.l.b16 %v550
        %v583 = vunpack.c.l.b16 %v551
        %v584 = vunpack.c.l.b16 %v552
        %v585 = vunpack.c.l.b16 %v553
        %v586 = vunpack.c.l.b16 %v554
        %v587 = vpack.c.b16 %v572, %v571
        %v588 = vpack.c.b16 %v574, %v573
        %v589 = vpack.c.b16 %v576, %v575
        %v590 = vpack.c.b16 %v578, %v577
        %v591 = vpack.c.b16 %v580, %v579
        %v592 = vpack.c.b16 %v582, %v581
        %v593 = vpack.c.b16 %v584, %v583
        %v594 = vpack.c.b16 %v586, %v585
        %603 = vmatpush.bf16.msra.mxu0 %v594
        %604 = vmatpush.bf16.msra.mxu0 %v593
        %605 = vmatpush.bf16.msra.mxu0 %v592
        %606 = vmatpush.bf16.msra.mxu0 %v591
        %607 = vmatpush.bf16.msra.mxu0 %v590
        %608 = vmatpush.bf16.msra.mxu0 %v589
        %609 = vmatpush.bf16.msra.mxu0 %v588
        %610 = vmatpush.bf16.msra.mxu0 %v587
        %611 = vmatmul.bf16.gmra.mxu0 %v530
        %v612 = vpop.f32.mrf.mxu0
        %v613 = vadd.f32 0.0, %v612
        %v614 = vpop.f32.mrf.mxu0
        %v615 = vadd.f32 0.0, %v614
        %616 = vmatmul.bf16.gmra.mxu0 %v531
        %v617 = vpop.f32.mrf.mxu0
        %v618 = vadd.f32 0.0, %v617
        %v619 = vpop.f32.mrf.mxu0
        %v620 = vadd.f32 0.0, %v619
        %621 = vmatmul.bf16.gmra.mxu0 %v532
        %v622 = vpop.f32.mrf.mxu0
        %v623 = vadd.f32 0.0, %v622
        %v624 = vpop.f32.mrf.mxu0
        %v625 = vadd.f32 0.0, %v624
        %626 = vmatmul.bf16.gmra.mxu0 %v533
        %v627 = vpop.f32.mrf.mxu0
        %v628 = vadd.f32 0.0, %v627
        %v629 = vpop.f32.mrf.mxu0
        %v630 = vadd.f32 0.0, %v629
        %631 = vmatmul.bf16.gmra.mxu0 %v534
        %v632 = vpop.f32.mrf.mxu0
        %v633 = vadd.f32 0.0, %v632
        %v634 = vpop.f32.mrf.mxu0
        %v635 = vadd.f32 0.0, %v634
        %636 = vmatmul.bf16.gmra.mxu0 %v535
        %v637 = vpop.f32.mrf.mxu0
        %v638 = vadd.f32 0.0, %v637
        %v639 = vpop.f32.mrf.mxu0
        %v640 = vadd.f32 0.0, %v639
        %641 = vmatmul.bf16.gmra.mxu0 %v536
        %v642 = vpop.f32.mrf.mxu0
        %v643 = vadd.f32 0.0, %v642
        %v644 = vpop.f32.mrf.mxu0
        %v645 = vadd.f32 0.0, %v644
        %646 = vmatmul.bf16.gmra.mxu0 %v537
        %v647 = vpop.f32.mrf.mxu0
        %v648 = vadd.f32 0.0, %v647
        %v649 = vpop.f32.mrf.mxu0
        %v650 = vadd.f32 0.0, %v649
        %651 = vdwg.mxu0
        %v652 = vadd.f32 %v475, %v613
        %v653 = vadd.f32 %v477, %v615
        %v654 = vadd.f32 %v480, %v618
        %v655 = vadd.f32 %v482, %v620
        %v656 = vadd.f32 %v485, %v623
        %v657 = vadd.f32 %v487, %v625
        %v658 = vadd.f32 %v490, %v628
        %v659 = vadd.f32 %v492, %v630
        %v660 = vadd.f32 %v495, %v633
        %v661 = vadd.f32 %v497, %v635
        %v662 = vadd.f32 %v500, %v638
        %v663 = vadd.f32 %v502, %v640
        %v664 = vadd.f32 %v505, %v643
        %v665 = vadd.f32 %v507, %v645
        %v666 = vadd.f32 %v510, %v648
        %v667 = vadd.f32 %v512, %v650
        %v668 = vld [vmem:[#allocation2 + $0xe] sm:$0xff]
        %v669 = vld [vmem:[#allocation2 + $0x16] sm:$0xff]
        %v670 = vld [vmem:[#allocation2 + $0x1e] sm:$0xff]
        %v671 = vld [vmem:[#allocation2 + $0x26] sm:$0xff]
        %v672 = vld [vmem:[#allocation2 + $0x2e] sm:$0xff]
        %v673 = vld [vmem:[#allocation2 + $0x36] sm:$0xff]
        %v674 = vld [vmem:[#allocation2 + $0x3e] sm:$0xff]
        %v675 = vld [vmem:[#allocation2 + $0x46] sm:$0xff]
        %v676 = vld [vmem:[#allocation2 + $0x4e] sm:$0xff]
        %v677 = vld [vmem:[#allocation2 + $0x56] sm:$0xff]
        %v678 = vld [vmem:[#allocation2 + $0x5e] sm:$0xff]
        %v679 = vld [vmem:[#allocation2 + $0x66] sm:$0xff]
        %v680 = vld [vmem:[#allocation2 + $0x6e] sm:$0xff]
        %v681 = vld [vmem:[#allocation2 + $0x76] sm:$0xff]
        %v682 = vld [vmem:[#allocation2 + $0x7e] sm:$0xff]
        %v683 = vld [vmem:[#allocation2 + $0x86] sm:$0xff]
        %v684 = vpack.c.bf16 %v669, %v668
        %v685 = vpack.c.bf16 %v671, %v670
        %v686 = vpack.c.bf16 %v673, %v672
        %v687 = vpack.c.bf16 %v675, %v674
        %v688 = vpack.c.bf16 %v677, %v676
        %v689 = vpack.c.bf16 %v679, %v678
        %v690 = vpack.c.bf16 %v681, %v680
        %v691 = vpack.c.bf16 %v683, %v682
        %s692 = scalar_lea.vmem [#allocation4], 192
        %v693 = vld [vmem:[%s692] sm:$0xf]
        %v694 = vld [vmem:[%s692 + $0x4] sm:$0xf]
        %v695 = vld [vmem:[%s692 + $0x8] sm:$0xf]
        %v696 = vld [vmem:[%s692 + $0xc] sm:$0xf]
        %v697 = vld [vmem:[%s692 + $0x10] sm:$0xf]
        %v698 = vld [vmem:[%s692 + $0x14] sm:$0xf]
        %v699 = vld [vmem:[%s692 + $0x18] sm:$0xf]
        %v700 = vld [vmem:[%s692 + $0x1c] sm:$0xf]
        %v701 = vld [vmem:[%s692 + $0x20] sm:$0xf]
        %v702 = vld [vmem:[%s692 + $0x24] sm:$0xf]
        %v703 = vld [vmem:[%s692 + $0x28] sm:$0xf]
        %v704 = vld [vmem:[%s692 + $0x2c] sm:$0xf]
        %v705 = vld [vmem:[%s692 + $0x30] sm:$0xf]
        %v706 = vld [vmem:[%s692 + $0x34] sm:$0xf]
        %v707 = vld [vmem:[%s692 + $0x38] sm:$0xf]
        %v708 = vld [vmem:[%s692 + $0x3c] sm:$0xf]
        %v725 = vunpack.c.l.b16 %v693
        %v726 = vunpack.c.l.b16 %v694
        %v727 = vunpack.c.l.b16 %v695
        %v728 = vunpack.c.l.b16 %v696
        %v729 = vunpack.c.l.b16 %v697
        %v730 = vunpack.c.l.b16 %v698
        %v731 = vunpack.c.l.b16 %v699
        %v732 = vunpack.c.l.b16 %v700
        %v733 = vunpack.c.l.b16 %v701
        %v734 = vunpack.c.l.b16 %v702
        %v735 = vunpack.c.l.b16 %v703
        %v736 = vunpack.c.l.b16 %v704
        %v737 = vunpack.c.l.b16 %v705
        %v738 = vunpack.c.l.b16 %v706
        %v739 = vunpack.c.l.b16 %v707
        %v740 = vunpack.c.l.b16 %v708
        %v741 = vpack.c.b16 %v726, %v725
        %v742 = vpack.c.b16 %v728, %v727
        %v743 = vpack.c.b16 %v730, %v729
        %v744 = vpack.c.b16 %v732, %v731
        %v745 = vpack.c.b16 %v734, %v733
        %v746 = vpack.c.b16 %v736, %v735
        %v747 = vpack.c.b16 %v738, %v737
        %v748 = vpack.c.b16 %v740, %v739
        %757 = vmatpush.bf16.msra.mxu0 %v748
        %758 = vmatpush.bf16.msra.mxu0 %v747
        %759 = vmatpush.bf16.msra.mxu0 %v746
        %760 = vmatpush.bf16.msra.mxu0 %v745
        %761 = vmatpush.bf16.msra.mxu0 %v744
        %762 = vmatpush.bf16.msra.mxu0 %v743
        %763 = vmatpush.bf16.msra.mxu0 %v742
        %764 = vmatpush.bf16.msra.mxu0 %v741
        %765 = vmatmul.bf16.gmra.mxu0 %v684
        %v766 = vpop.f32.mrf.mxu0
        %v767 = vadd.f32 0.0, %v766
        %v768 = vpop.f32.mrf.mxu0
        %v769 = vadd.f32 0.0, %v768
        %770 = vmatmul.bf16.gmra.mxu0 %v685
        %v771 = vpop.f32.mrf.mxu0
        %v772 = vadd.f32 0.0, %v771
        %v773 = vpop.f32.mrf.mxu0
        %v774 = vadd.f32 0.0, %v773
        %775 = vmatmul.bf16.gmra.mxu0 %v686
        %v776 = vpop.f32.mrf.mxu0
        %v777 = vadd.f32 0.0, %v776
        %v778 = vpop.f32.mrf.mxu0
        %v779 = vadd.f32 0.0, %v778
        %780 = vmatmul.bf16.gmra.mxu0 %v687
        %v781 = vpop.f32.mrf.mxu0
        %v782 = vadd.f32 0.0, %v781
        %v783 = vpop.f32.mrf.mxu0
        %v784 = vadd.f32 0.0, %v783
        %785 = vmatmul.bf16.gmra.mxu0 %v688
        %v786 = vpop.f32.mrf.mxu0
        %v787 = vadd.f32 0.0, %v786
        %v788 = vpop.f32.mrf.mxu0
        %v789 = vadd.f32 0.0, %v788
        %790 = vmatmul.bf16.gmra.mxu0 %v689
        %v791 = vpop.f32.mrf.mxu0
        %v792 = vadd.f32 0.0, %v791
        %v793 = vpop.f32.mrf.mxu0
        %v794 = vadd.f32 0.0, %v793
        %795 = vmatmul.bf16.gmra.mxu0 %v690
        %v796 = vpop.f32.mrf.mxu0
        %v797 = vadd.f32 0.0, %v796
        %v798 = vpop.f32.mrf.mxu0
        %v799 = vadd.f32 0.0, %v798
        %800 = vmatmul.bf16.gmra.mxu0 %v691
        %v801 = vpop.f32.mrf.mxu0
        %v802 = vadd.f32 0.0, %v801
        %v803 = vpop.f32.mrf.mxu0
        %v804 = vadd.f32 0.0, %v803
        %805 = vdwg.mxu0
        %v806 = vadd.f32 %v652, %v767
        %v807 = vadd.f32 %v653, %v769
        %v808 = vadd.f32 %v654, %v772
        %v809 = vadd.f32 %v655, %v774
        %v810 = vadd.f32 %v656, %v777
        %v811 = vadd.f32 %v657, %v779
        %v812 = vadd.f32 %v658, %v782
        %v813 = vadd.f32 %v659, %v784
        %v814 = vadd.f32 %v660, %v787
        %v815 = vadd.f32 %v661, %v789
        %v816 = vadd.f32 %v662, %v792
        %v817 = vadd.f32 %v663, %v794
        %v818 = vadd.f32 %v664, %v797
        %v819 = vadd.f32 %v665, %v799
        %v820 = vadd.f32 %v666, %v802
        %v821 = vadd.f32 %v667, %v804
        %v822 = vld [vmem:[#allocation2 + $0xf] sm:$0xff]
        %v823 = vld [vmem:[#allocation2 + $0x17] sm:$0xff]
        %v824 = vld [vmem:[#allocation2 + $0x1f] sm:$0xff]
        %v825 = vld [vmem:[#allocation2 + $0x27] sm:$0xff]
        %v826 = vld [vmem:[#allocation2 + $0x2f] sm:$0xff]
        %v827 = vld [vmem:[#allocation2 + $0x37] sm:$0xff]
        %v828 = vld [vmem:[#allocation2 + $0x3f] sm:$0xff]
        %v829 = vld [vmem:[#allocation2 + $0x47] sm:$0xff]
        %v830 = vld [vmem:[#allocation2 + $0x4f] sm:$0xff]
        %v831 = vld [vmem:[#allocation2 + $0x57] sm:$0xff]
        %v832 = vld [vmem:[#allocation2 + $0x5f] sm:$0xff]
        %v833 = vld [vmem:[#allocation2 + $0x67] sm:$0xff]
        %v834 = vld [vmem:[#allocation2 + $0x6f] sm:$0xff]
        %v835 = vld [vmem:[#allocation2 + $0x77] sm:$0xff]
        %v836 = vld [vmem:[#allocation2 + $0x7f] sm:$0xff]
        %v837 = vld [vmem:[#allocation2 + $0x87] sm:$0xff]
        %v838 = vpack.c.bf16 %v823, %v822
        %v839 = vpack.c.bf16 %v825, %v824
        %v840 = vpack.c.bf16 %v827, %v826
        %v841 = vpack.c.bf16 %v829, %v828
        %v842 = vpack.c.bf16 %v831, %v830
        %v843 = vpack.c.bf16 %v833, %v832
        %v844 = vpack.c.bf16 %v835, %v834
        %v845 = vpack.c.bf16 %v837, %v836
        %s846 = scalar_lea.vmem [#allocation4], 256
        %v847 = vld [vmem:[%s846] sm:$0xf]
        %v848 = vld [vmem:[%s846 + $0x4] sm:$0xf]
        %v849 = vld [vmem:[%s846 + $0x8] sm:$0xf]
        %v850 = vld [vmem:[%s846 + $0xc] sm:$0xf]
        %v851 = vld [vmem:[%s846 + $0x10] sm:$0xf]
        %v852 = vld [vmem:[%s846 + $0x14] sm:$0xf]
        %v853 = vld [vmem:[%s846 + $0x18] sm:$0xf]
        %v854 = vld [vmem:[%s846 + $0x1c] sm:$0xf]
        %v855 = vld [vmem:[%s846 + $0x20] sm:$0xf]
        %v856 = vld [vmem:[%s846 + $0x24] sm:$0xf]
        %v857 = vld [vmem:[%s846 + $0x28] sm:$0xf]
        %v858 = vld [vmem:[%s846 + $0x2c] sm:$0xf]
        %v859 = vld [vmem:[%s846 + $0x30] sm:$0xf]
        %v860 = vld [vmem:[%s846 + $0x34] sm:$0xf]
        %v861 = vld [vmem:[%s846 + $0x38] sm:$0xf]
        %v862 = vld [vmem:[%s846 + $0x3c] sm:$0xf]
        %v879 = vunpack.c.l.b16 %v847
        %v880 = vunpack.c.l.b16 %v848
        %v881 = vunpack.c.l.b16 %v849
        %v882 = vunpack.c.l.b16 %v850
        %v883 = vunpack.c.l.b16 %v851
        %v884 = vunpack.c.l.b16 %v852
        %v885 = vunpack.c.l.b16 %v853
        %v886 = vunpack.c.l.b16 %v854
        %v887 = vunpack.c.l.b16 %v855
        %v888 = vunpack.c.l.b16 %v856
        %v889 = vunpack.c.l.b16 %v857
        %v890 = vunpack.c.l.b16 %v858
        %v891 = vunpack.c.l.b16 %v859
        %v892 = vunpack.c.l.b16 %v860
        %v893 = vunpack.c.l.b16 %v861
        %v894 = vunpack.c.l.b16 %v862
        %v895 = vpack.c.b16 %v880, %v879
        %v896 = vpack.c.b16 %v882, %v881
        %v897 = vpack.c.b16 %v884, %v883
        %v898 = vpack.c.b16 %v886, %v885
        %v899 = vpack.c.b16 %v888, %v887
        %v900 = vpack.c.b16 %v890, %v889
        %v901 = vpack.c.b16 %v892, %v891
        %v902 = vpack.c.b16 %v894, %v893
        %911 = vmatpush.bf16.msra.mxu0 %v902
        %912 = vmatpush.bf16.msra.mxu0 %v901
        %913 = vmatpush.bf16.msra.mxu0 %v900
        %914 = vmatpush.bf16.msra.mxu0 %v899
        %915 = vmatpush.bf16.msra.mxu0 %v898
        %916 = vmatpush.bf16.msra.mxu0 %v897
        %917 = vmatpush.bf16.msra.mxu0 %v896
        %918 = vmatpush.bf16.msra.mxu0 %v895
        %919 = vmatmul.bf16.gmra.mxu0 %v838
        %v920 = vpop.f32.mrf.mxu0
        %v921 = vadd.f32 0.0, %v920
        %v922 = vpop.f32.mrf.mxu0
        %v923 = vadd.f32 0.0, %v922
        %924 = vmatmul.bf16.gmra.mxu0 %v839
        %v925 = vpop.f32.mrf.mxu0
        %v926 = vadd.f32 0.0, %v925
        %v927 = vpop.f32.mrf.mxu0
        %v928 = vadd.f32 0.0, %v927
        %929 = vmatmul.bf16.gmra.mxu0 %v840
        %v930 = vpop.f32.mrf.mxu0
        %v931 = vadd.f32 0.0, %v930
        %v932 = vpop.f32.mrf.mxu0
        %v933 = vadd.f32 0.0, %v932
        %934 = vmatmul.bf16.gmra.mxu0 %v841
        %v935 = vpop.f32.mrf.mxu0
        %v936 = vadd.f32 0.0, %v935
        %v937 = vpop.f32.mrf.mxu0
        %v938 = vadd.f32 0.0, %v937
        %939 = vmatmul.bf16.gmra.mxu0 %v842
        %v940 = vpop.f32.mrf.mxu0
        %v941 = vadd.f32 0.0, %v940
        %v942 = vpop.f32.mrf.mxu0
        %v943 = vadd.f32 0.0, %v942
        %944 = vmatmul.bf16.gmra.mxu0 %v843
        %v945 = vpop.f32.mrf.mxu0
        %v946 = vadd.f32 0.0, %v945
        %v947 = vpop.f32.mrf.mxu0
        %v948 = vadd.f32 0.0, %v947
        %949 = vmatmul.bf16.gmra.mxu0 %v844
        %v950 = vpop.f32.mrf.mxu0
        %v951 = vadd.f32 0.0, %v950
        %v952 = vpop.f32.mrf.mxu0
        %v953 = vadd.f32 0.0, %v952
        %954 = vmatmul.bf16.gmra.mxu0 %v845
        %v955 = vpop.f32.mrf.mxu0
        %v956 = vadd.f32 0.0, %v955
        %v957 = vpop.f32.mrf.mxu0
        %v958 = vadd.f32 0.0, %v957
        %959 = vdwg.mxu0
        %v960 = vadd.f32 %v806, %v921
        %v961 = vadd.f32 %v807, %v923
        %v962 = vadd.f32 %v808, %v926
        %v963 = vadd.f32 %v809, %v928
        %v964 = vadd.f32 %v810, %v931
        %v965 = vadd.f32 %v811, %v933
        %v966 = vadd.f32 %v812, %v936
        %v967 = vadd.f32 %v813, %v938
        %v968 = vadd.f32 %v814, %v941
        %v969 = vadd.f32 %v815, %v943
        %v970 = vadd.f32 %v816, %v946
        %v971 = vadd.f32 %v817, %v948
        %v972 = vadd.f32 %v818, %v951
        %v973 = vadd.f32 %v819, %v953
        %v974 = vadd.f32 %v820, %v956
        %v975 = vadd.f32 %v821, %v958
        %v976 = vld [vmem:[#allocation2 + $0x10] sm:$0xff]
        %v977 = vld [vmem:[#allocation2 + $0x18] sm:$0xff]
        %v978 = vld [vmem:[#allocation2 + $0x20] sm:$0xff]
        %v979 = vld [vmem:[#allocation2 + $0x28] sm:$0xff]
        %v980 = vld [vmem:[#allocation2 + $0x30] sm:$0xff]
        %v981 = vld [vmem:[#allocation2 + $0x38] sm:$0xff]
        %v982 = vld [vmem:[#allocation2 + $0x40] sm:$0xff]
        %v983 = vld [vmem:[#allocation2 + $0x48] sm:$0xff]
        %v984 = vld [vmem:[#allocation2 + $0x50] sm:$0xff]
        %v985 = vld [vmem:[#allocation2 + $0x58] sm:$0xff]
        %v986 = vld [vmem:[#allocation2 + $0x60] sm:$0xff]
        %v987 = vld [vmem:[#allocation2 + $0x68] sm:$0xff]
        %v988 = vld [vmem:[#allocation2 + $0x70] sm:$0xff]
        %v989 = vld [vmem:[#allocation2 + $0x78] sm:$0xff]
        %v990 = vld [vmem:[#allocation2 + $0x80] sm:$0xff]
        %v991 = vld [vmem:[#allocation2 + $0x88] sm:$0xff]
        %v992 = vpack.c.bf16 %v977, %v976
        %v993 = vpack.c.bf16 %v979, %v978
        %v994 = vpack.c.bf16 %v981, %v980
        %v995 = vpack.c.bf16 %v983, %v982
        %v996 = vpack.c.bf16 %v985, %v984
        %v997 = vpack.c.bf16 %v987, %v986
        %v998 = vpack.c.bf16 %v989, %v988
        %v999 = vpack.c.bf16 %v991, %v990
        %s1000 = scalar_lea.vmem [#allocation4], 320
        %v1001 = vld [vmem:[%s1000] sm:$0xf]
        %v1002 = vld [vmem:[%s1000 + $0x4] sm:$0xf]
        %v1003 = vld [vmem:[%s1000 + $0x8] sm:$0xf]
        %v1004 = vld [vmem:[%s1000 + $0xc] sm:$0xf]
        %v1005 = vld [vmem:[%s1000 + $0x10] sm:$0xf]
        %v1006 = vld [vmem:[%s1000 + $0x14] sm:$0xf]
        %v1007 = vld [vmem:[%s1000 + $0x18] sm:$0xf]
        %v1008 = vld [vmem:[%s1000 + $0x1c] sm:$0xf]
        %v1009 = vld [vmem:[%s1000 + $0x20] sm:$0xf]
        %v1010 = vld [vmem:[%s1000 + $0x24] sm:$0xf]
        %v1011 = vld [vmem:[%s1000 + $0x28] sm:$0xf]
        %v1012 = vld [vmem:[%s1000 + $0x2c] sm:$0xf]
        %v1013 = vld [vmem:[%s1000 + $0x30] sm:$0xf]
        %v1014 = vld [vmem:[%s1000 + $0x34] sm:$0xf]
        %v1015 = vld [vmem:[%s1000 + $0x38] sm:$0xf]
        %v1016 = vld [vmem:[%s1000 + $0x3c] sm:$0xf]
        %v1033 = vunpack.c.l.b16 %v1001
        %v1034 = vunpack.c.l.b16 %v1002
        %v1035 = vunpack.c.l.b16 %v1003
        %v1036 = vunpack.c.l.b16 %v1004
        %v1037 = vunpack.c.l.b16 %v1005
        %v1038 = vunpack.c.l.b16 %v1006
        %v1039 = vunpack.c.l.b16 %v1007
        %v1040 = vunpack.c.l.b16 %v1008
        %v1041 = vunpack.c.l.b16 %v1009
        %v1042 = vunpack.c.l.b16 %v1010
        %v1043 = vunpack.c.l.b16 %v1011
        %v1044 = vunpack.c.l.b16 %v1012
        %v1045 = vunpack.c.l.b16 %v1013
        %v1046 = vunpack.c.l.b16 %v1014
        %v1047 = vunpack.c.l.b16 %v1015
        %v1048 = vunpack.c.l.b16 %v1016
        %v1049 = vpack.c.b16 %v1034, %v1033
        %v1050 = vpack.c.b16 %v1036, %v1035
        %v1051 = vpack.c.b16 %v1038, %v1037
        %v1052 = vpack.c.b16 %v1040, %v1039
        %v1053 = vpack.c.b16 %v1042, %v1041
        %v1054 = vpack.c.b16 %v1044, %v1043
        %v1055 = vpack.c.b16 %v1046, %v1045
        %v1056 = vpack.c.b16 %v1048, %v1047
        %1065 = vmatpush.bf16.msra.mxu0 %v1056
        %1066 = vmatpush.bf16.msra.mxu0 %v1055
        %1067 = vmatpush.bf16.msra.mxu0 %v1054
        %1068 = vmatpush.bf16.msra.mxu0 %v1053
        %1069 = vmatpush.bf16.msra.mxu0 %v1052
        %1070 = vmatpush.bf16.msra.mxu0 %v1051
        %1071 = vmatpush.bf16.msra.mxu0 %v1050
        %1072 = vmatpush.bf16.msra.mxu0 %v1049
        %1073 = vmatmul.bf16.gmra.mxu0 %v992
        %v1074 = vpop.f32.mrf.mxu0
        %v1075 = vadd.f32 0.0, %v1074
        %v1076 = vpop.f32.mrf.mxu0
        %v1077 = vadd.f32 0.0, %v1076
        %1078 = vmatmul.bf16.gmra.mxu0 %v993
        %v1079 = vpop.f32.mrf.mxu0
        %v1080 = vadd.f32 0.0, %v1079
        %v1081 = vpop.f32.mrf.mxu0
        %v1082 = vadd.f32 0.0, %v1081
        %1083 = vmatmul.bf16.gmra.mxu0 %v994
        %v1084 = vpop.f32.mrf.mxu0
        %v1085 = vadd.f32 0.0, %v1084
        %v1086 = vpop.f32.mrf.mxu0
        %v1087 = vadd.f32 0.0, %v1086
        %1088 = vmatmul.bf16.gmra.mxu0 %v995
        %v1089 = vpop.f32.mrf.mxu0
        %v1090 = vadd.f32 0.0, %v1089
        %v1091 = vpop.f32.mrf.mxu0
        %v1092 = vadd.f32 0.0, %v1091
        %1093 = vmatmul.bf16.gmra.mxu0 %v996
        %v1094 = vpop.f32.mrf.mxu0
        %v1095 = vadd.f32 0.0, %v1094
        %v1096 = vpop.f32.mrf.mxu0
        %v1097 = vadd.f32 0.0, %v1096
        %1098 = vmatmul.bf16.gmra.mxu0 %v997
        %v1099 = vpop.f32.mrf.mxu0
        %v1100 = vadd.f32 0.0, %v1099
        %v1101 = vpop.f32.mrf.mxu0
        %v1102 = vadd.f32 0.0, %v1101
        %1103 = vmatmul.bf16.gmra.mxu0 %v998
        %v1104 = vpop.f32.mrf.mxu0
        %v1105 = vadd.f32 0.0, %v1104
        %v1106 = vpop.f32.mrf.mxu0
        %v1107 = vadd.f32 0.0, %v1106
        %1108 = vmatmul.bf16.gmra.mxu0 %v999
        %v1109 = vpop.f32.mrf.mxu0
        %v1110 = vadd.f32 0.0, %v1109
        %v1111 = vpop.f32.mrf.mxu0
        %v1112 = vadd.f32 0.0, %v1111
        %1113 = vdwg.mxu0
        %v1114 = vadd.f32 %v960, %v1075
        %v1115 = vadd.f32 %v961, %v1077
        %v1116 = vadd.f32 %v962, %v1080
        %v1117 = vadd.f32 %v963, %v1082
        %v1118 = vadd.f32 %v964, %v1085
        %v1119 = vadd.f32 %v965, %v1087
        %v1120 = vadd.f32 %v966, %v1090
        %v1121 = vadd.f32 %v967, %v1092
        %v1122 = vadd.f32 %v968, %v1095
        %v1123 = vadd.f32 %v969, %v1097
        %v1124 = vadd.f32 %v970, %v1100
        %v1125 = vadd.f32 %v971, %v1102
        %v1126 = vadd.f32 %v972, %v1105
        %v1127 = vadd.f32 %v973, %v1107
        %v1128 = vadd.f32 %v974, %v1110
        %v1129 = vadd.f32 %v975, %v1112
        %v1130 = vld [vmem:[#allocation2 + $0x1c] sm:$0xff]
        %v1131 = vld [vmem:[#allocation2 + $0x24] sm:$0xff]
        %v1132 = vld [vmem:[#allocation2 + $0x2c] sm:$0xff]
        %v1133 = vld [vmem:[#allocation2 + $0x34] sm:$0xff]
        %v1134 = vld [vmem:[#allocation2 + $0x3c] sm:$0xff]
        %v1135 = vld [vmem:[#allocation2 + $0x44] sm:$0xff]
        %v1136 = vld [vmem:[#allocation2 + $0x4c] sm:$0xff]
        %v1137 = vld [vmem:[#allocation2 + $0x54] sm:$0xff]
        %v1138 = vld [vmem:[#allocation2 + $0x5c] sm:$0xff]
        %v1139 = vld [vmem:[#allocation2 + $0x64] sm:$0xff]
        %v1140 = vld [vmem:[#allocation2 + $0x6c] sm:$0xff]
        %v1141 = vld [vmem:[#allocation2 + $0x74] sm:$0xff]
        %v1142 = vld [vmem:[#allocation2 + $0x7c] sm:$0xff]
        %v1143 = vld [vmem:[#allocation2 + $0x84] sm:$0xff]
        %v1144 = vld [vmem:[#allocation2 + $0x8c] sm:$0xff]
        %v1145 = vld [vmem:[#allocation2 + $0x94] sm:$0xff]
        %v1146 = vpack.c.bf16 %v1131, %v1130
        %v1147 = vpack.c.bf16 %v1133, %v1132
        %v1148 = vpack.c.bf16 %v1135, %v1134
        %v1149 = vpack.c.bf16 %v1137, %v1136
        %v1150 = vpack.c.bf16 %v1139, %v1138
        %v1151 = vpack.c.bf16 %v1141, %v1140
        %v1152 = vpack.c.bf16 %v1143, %v1142
        %v1153 = vpack.c.bf16 %v1145, %v1144
        %s1154 = scalar_lea.vmem [#allocation4], 384
        %v1155 = vld [vmem:[%s1154] sm:$0xf]
        %v1156 = vld [vmem:[%s1154 + $0x4] sm:$0xf]
        %v1157 = vld [vmem:[%s1154 + $0x8] sm:$0xf]
        %v1158 = vld [vmem:[%s1154 + $0xc] sm:$0xf]
        %v1159 = vld [vmem:[%s1154 + $0x10] sm:$0xf]
        %v1160 = vld [vmem:[%s1154 + $0x14] sm:$0xf]
        %v1161 = vld [vmem:[%s1154 + $0x18] sm:$0xf]
        %v1162 = vld [vmem:[%s1154 + $0x1c] sm:$0xf]
        %v1163 = vld [vmem:[%s1154 + $0x20] sm:$0xf]
        %v1164 = vld [vmem:[%s1154 + $0x24] sm:$0xf]
        %v1165 = vld [vmem:[%s1154 + $0x28] sm:$0xf]
        %v1166 = vld [vmem:[%s1154 + $0x2c] sm:$0xf]
        %v1167 = vld [vmem:[%s1154 + $0x30] sm:$0xf]
        %v1168 = vld [vmem:[%s1154 + $0x34] sm:$0xf]
        %v1169 = vld [vmem:[%s1154 + $0x38] sm:$0xf]
        %v1170 = vld [vmem:[%s1154 + $0x3c] sm:$0xf]
        %v1187 = vunpack.c.l.b16 %v1155
        %v1188 = vunpack.c.l.b16 %v1156
        %v1189 = vunpack.c.l.b16 %v1157
        %v1190 = vunpack.c.l.b16 %v1158
        %v1191 = vunpack.c.l.b16 %v1159
        %v1192 = vunpack.c.l.b16 %v1160
        %v1193 = vunpack.c.l.b16 %v1161
        %v1194 = vunpack.c.l.b16 %v1162
        %v1195 = vunpack.c.l.b16 %v1163
        %v1196 = vunpack.c.l.b16 %v1164
        %v1197 = vunpack.c.l.b16 %v1165
        %v1198 = vunpack.c.l.b16 %v1166
        %v1199 = vunpack.c.l.b16 %v1167
        %v1200 = vunpack.c.l.b16 %v1168
        %v1201 = vunpack.c.l.b16 %v1169
        %v1202 = vunpack.c.l.b16 %v1170
        %v1203 = vpack.c.b16 %v1188, %v1187
        %v1204 = vpack.c.b16 %v1190, %v1189
        %v1205 = vpack.c.b16 %v1192, %v1191
        %v1206 = vpack.c.b16 %v1194, %v1193
        %v1207 = vpack.c.b16 %v1196, %v1195
        %v1208 = vpack.c.b16 %v1198, %v1197
        %v1209 = vpack.c.b16 %v1200, %v1199
        %v1210 = vpack.c.b16 %v1202, %v1201
        %1219 = vmatpush.bf16.msra.mxu0 %v1210
        %1220 = vmatpush.bf16.msra.mxu0 %v1209
        %1221 = vmatpush.bf16.msra.mxu0 %v1208
        %1222 = vmatpush.bf16.msra.mxu0 %v1207
        %1223 = vmatpush.bf16.msra.mxu0 %v1206
        %1224 = vmatpush.bf16.msra.mxu0 %v1205
        %1225 = vmatpush.bf16.msra.mxu0 %v1204
        %1226 = vmatpush.bf16.msra.mxu0 %v1203
        %1227 = vmatmul.bf16.gmra.mxu0 %v1146
        %v1228 = vpop.f32.mrf.mxu0
        %v1229 = vadd.f32 0.0, %v1228
        %v1230 = vpop.f32.mrf.mxu0
        %v1231 = vadd.f32 0.0, %v1230
        %1232 = vmatmul.bf16.gmra.mxu0 %v1147
        %v1233 = vpop.f32.mrf.mxu0
        %v1234 = vadd.f32 0.0, %v1233
        %v1235 = vpop.f32.mrf.mxu0
        %v1236 = vadd.f32 0.0, %v1235
        %1237 = vmatmul.bf16.gmra.mxu0 %v1148
        %v1238 = vpop.f32.mrf.mxu0
        %v1239 = vadd.f32 0.0, %v1238
        %v1240 = vpop.f32.mrf.mxu0
        %v1241 = vadd.f32 0.0, %v1240
        %1242 = vmatmul.bf16.gmra.mxu0 %v1149
        %v1243 = vpop.f32.mrf.mxu0
        %v1244 = vadd.f32 0.0, %v1243
        %v1245 = vpop.f32.mrf.mxu0
        %v1246 = vadd.f32 0.0, %v1245
        %1247 = vmatmul.bf16.gmra.mxu0 %v1150
        %v1248 = vpop.f32.mrf.mxu0
        %v1249 = vadd.f32 0.0, %v1248
        %v1250 = vpop.f32.mrf.mxu0
        %v1251 = vadd.f32 0.0, %v1250
        %1252 = vmatmul.bf16.gmra.mxu0 %v1151
        %v1253 = vpop.f32.mrf.mxu0
        %v1254 = vadd.f32 0.0, %v1253
        %v1255 = vpop.f32.mrf.mxu0
        %v1256 = vadd.f32 0.0, %v1255
        %1257 = vmatmul.bf16.gmra.mxu0 %v1152
        %v1258 = vpop.f32.mrf.mxu0
        %v1259 = vadd.f32 0.0, %v1258
        %v1260 = vpop.f32.mrf.mxu0
        %v1261 = vadd.f32 0.0, %v1260
        %1262 = vmatmul.bf16.gmra.mxu0 %v1153
        %v1263 = vpop.f32.mrf.mxu0
        %v1264 = vadd.f32 0.0, %v1263
        %v1265 = vpop.f32.mrf.mxu0
        %v1266 = vadd.f32 0.0, %v1265
        %1267 = vdwg.mxu0
        %v1268 = vadd.f32 %v1114, %v1229
        %v1269 = vadd.f32 %v1115, %v1231
        %v1270 = vadd.f32 %v1116, %v1234
        %v1271 = vadd.f32 %v1117, %v1236
        %v1272 = vadd.f32 %v1118, %v1239
        %v1273 = vadd.f32 %v1119, %v1241
        %v1274 = vadd.f32 %v1120, %v1244
        %v1275 = vadd.f32 %v1121, %v1246
        %v1276 = vadd.f32 %v1122, %v1249
        %v1277 = vadd.f32 %v1123, %v1251
        %v1278 = vadd.f32 %v1124, %v1254
        %v1279 = vadd.f32 %v1125, %v1256
        %v1280 = vadd.f32 %v1126, %v1259
        %v1281 = vadd.f32 %v1127, %v1261
        %v1282 = vadd.f32 %v1128, %v1264
        %v1283 = vadd.f32 %v1129, %v1266
        %v1284 = vld [vmem:[#allocation2 + $0x1d] sm:$0xff]
        %v1285 = vld [vmem:[#allocation2 + $0x25] sm:$0xff]
        %v1286 = vld [vmem:[#allocation2 + $0x2d] sm:$0xff]
        %v1287 = vld [vmem:[#allocation2 + $0x35] sm:$0xff]
        %v1288 = vld [vmem:[#allocation2 + $0x3d] sm:$0xff]
        %v1289 = vld [vmem:[#allocation2 + $0x45] sm:$0xff]
        %v1290 = vld [vmem:[#allocation2 + $0x4d] sm:$0xff]
        %v1291 = vld [vmem:[#allocation2 + $0x55] sm:$0xff]
        %v1292 = vld [vmem:[#allocation2 + $0x5d] sm:$0xff]
        %v1293 = vld [vmem:[#allocation2 + $0x65] sm:$0xff]
        %v1294 = vld [vmem:[#allocation2 + $0x6d] sm:$0xff]
        %v1295 = vld [vmem:[#allocation2 + $0x75] sm:$0xff]
        %v1296 = vld [vmem:[#allocation2 + $0x7d] sm:$0xff]
        %v1297 = vld [vmem:[#allocation2 + $0x85] sm:$0xff]
        %v1298 = vld [vmem:[#allocation2 + $0x8d] sm:$0xff]
        %v1299 = vld [vmem:[#allocation2 + $0x95] sm:$0xff]
        %v1300 = vpack.c.bf16 %v1285, %v1284
        %v1301 = vpack.c.bf16 %v1287, %v1286
        %v1302 = vpack.c.bf16 %v1289, %v1288
        %v1303 = vpack.c.bf16 %v1291, %v1290
        %v1304 = vpack.c.bf16 %v1293, %v1292
        %v1305 = vpack.c.bf16 %v1295, %v1294
        %v1306 = vpack.c.bf16 %v1297, %v1296
        %v1307 = vpack.c.bf16 %v1299, %v1298
        %s1308 = scalar_lea.vmem [#allocation4], 448
        %v1309 = vld [vmem:[%s1308] sm:$0xf]
        %v1310 = vld [vmem:[%s1308 + $0x4] sm:$0xf]
        %v1311 = vld [vmem:[%s1308 + $0x8] sm:$0xf]
        %v1312 = vld [vmem:[%s1308 + $0xc] sm:$0xf]
        %v1313 = vld [vmem:[%s1308 + $0x10] sm:$0xf]
        %v1314 = vld [vmem:[%s1308 + $0x14] sm:$0xf]
        %v1315 = vld [vmem:[%s1308 + $0x18] sm:$0xf]
        %v1316 = vld [vmem:[%s1308 + $0x1c] sm:$0xf]
        %v1317 = vld [vmem:[%s1308 + $0x20] sm:$0xf]
        %v1318 = vld [vmem:[%s1308 + $0x24] sm:$0xf]
        %v1319 = vld [vmem:[%s1308 + $0x28] sm:$0xf]
        %v1320 = vld [vmem:[%s1308 + $0x2c] sm:$0xf]
        %v1321 = vld [vmem:[%s1308 + $0x30] sm:$0xf]
        %v1322 = vld [vmem:[%s1308 + $0x34] sm:$0xf]
        %v1323 = vld [vmem:[%s1308 + $0x38] sm:$0xf]
        %v1324 = vld [vmem:[%s1308 + $0x3c] sm:$0xf]
        %v1341 = vunpack.c.l.b16 %v1309
        %v1342 = vunpack.c.l.b16 %v1310
        %v1343 = vunpack.c.l.b16 %v1311
        %v1344 = vunpack.c.l.b16 %v1312
        %v1345 = vunpack.c.l.b16 %v1313
        %v1346 = vunpack.c.l.b16 %v1314
        %v1347 = vunpack.c.l.b16 %v1315
        %v1348 = vunpack.c.l.b16 %v1316
        %v1349 = vunpack.c.l.b16 %v1317
        %v1350 = vunpack.c.l.b16 %v1318
        %v1351 = vunpack.c.l.b16 %v1319
        %v1352 = vunpack.c.l.b16 %v1320
        %v1353 = vunpack.c.l.b16 %v1321
        %v1354 = vunpack.c.l.b16 %v1322
        %v1355 = vunpack.c.l.b16 %v1323
        %v1356 = vunpack.c.l.b16 %v1324
        %v1357 = vpack.c.b16 %v1342, %v1341
        %v1358 = vpack.c.b16 %v1344, %v1343
        %v1359 = vpack.c.b16 %v1346, %v1345
        %v1360 = vpack.c.b16 %v1348, %v1347
        %v1361 = vpack.c.b16 %v1350, %v1349
        %v1362 = vpack.c.b16 %v1352, %v1351
        %v1363 = vpack.c.b16 %v1354, %v1353
        %v1364 = vpack.c.b16 %v1356, %v1355
        %1373 = vmatpush.bf16.msra.mxu0 %v1364
        %1374 = vmatpush.bf16.msra.mxu0 %v1363
        %1375 = vmatpush.bf16.msra.mxu0 %v1362
        %1376 = vmatpush.bf16.msra.mxu0 %v1361
        %1377 = vmatpush.bf16.msra.mxu0 %v1360
        %1378 = vmatpush.bf16.msra.mxu0 %v1359
        %1379 = vmatpush.bf16.msra.mxu0 %v1358
        %1380 = vmatpush.bf16.msra.mxu0 %v1357
        %1381 = vmatmul.bf16.gmra.mxu0 %v1300
        %v1382 = vpop.f32.mrf.mxu0
        %v1383 = vadd.f32 0.0, %v1382
        %v1384 = vpop.f32.mrf.mxu0
        %v1385 = vadd.f32 0.0, %v1384
        %1386 = vmatmul.bf16.gmra.mxu0 %v1301
        %v1387 = vpop.f32.mrf.mxu0
        %v1388 = vadd.f32 0.0, %v1387
        %v1389 = vpop.f32.mrf.mxu0
        %v1390 = vadd.f32 0.0, %v1389
        %1391 = vmatmul.bf16.gmra.mxu0 %v1302
        %v1392 = vpop.f32.mrf.mxu0
        %v1393 = vadd.f32 0.0, %v1392
        %v1394 = vpop.f32.mrf.mxu0
        %v1395 = vadd.f32 0.0, %v1394
        %1396 = vmatmul.bf16.gmra.mxu0 %v1303
        %v1397 = vpop.f32.mrf.mxu0
        %v1398 = vadd.f32 0.0, %v1397
        %v1399 = vpop.f32.mrf.mxu0
        %v1400 = vadd.f32 0.0, %v1399
        %1401 = vmatmul.bf16.gmra.mxu0 %v1304
        %v1402 = vpop.f32.mrf.mxu0
        %v1403 = vadd.f32 0.0, %v1402
        %v1404 = vpop.f32.mrf.mxu0
        %v1405 = vadd.f32 0.0, %v1404
        %1406 = vmatmul.bf16.gmra.mxu0 %v1305
        %v1407 = vpop.f32.mrf.mxu0
        %v1408 = vadd.f32 0.0, %v1407
        %v1409 = vpop.f32.mrf.mxu0
        %v1410 = vadd.f32 0.0, %v1409
        %1411 = vmatmul.bf16.gmra.mxu0 %v1306
        %v1412 = vpop.f32.mrf.mxu0
        %v1413 = vadd.f32 0.0, %v1412
        %v1414 = vpop.f32.mrf.mxu0
        %v1415 = vadd.f32 0.0, %v1414
        %1416 = vmatmul.bf16.gmra.mxu0 %v1307
        %v1417 = vpop.f32.mrf.mxu0
        %v1418 = vadd.f32 0.0, %v1417
        %v1419 = vpop.f32.mrf.mxu0
        %v1420 = vadd.f32 0.0, %v1419
        %1421 = vdwg.mxu0
        %v1422 = vadd.f32 %v1268, %v1383
        %v1423 = vadd.f32 %v1269, %v1385
        %v1424 = vadd.f32 %v1270, %v1388
        %v1425 = vadd.f32 %v1271, %v1390
        %v1426 = vadd.f32 %v1272, %v1393
        %v1427 = vadd.f32 %v1273, %v1395
        %v1428 = vadd.f32 %v1274, %v1398
        %v1429 = vadd.f32 %v1275, %v1400
        %v1430 = vadd.f32 %v1276, %v1403
        %v1431 = vadd.f32 %v1277, %v1405
        %v1432 = vadd.f32 %v1278, %v1408
        %v1433 = vadd.f32 %v1279, %v1410
        %v1434 = vadd.f32 %v1280, %v1413
        %v1435 = vadd.f32 %v1281, %v1415
        %v1436 = vadd.f32 %v1282, %v1418
        %v1437 = vadd.f32 %v1283, %v1420
        %v1438 = vld [vmem:[#allocation2 + $0x1e] sm:$0xff]
        %v1439 = vld [vmem:[#allocation2 + $0x26] sm:$0xff]
        %v1440 = vld [vmem:[#allocation2 + $0x2e] sm:$0xff]
        %v1441 = vld [vmem:[#allocation2 + $0x36] sm:$0xff]
        %v1442 = vld [vmem:[#allocation2 + $0x3e] sm:$0xff]
        %v1443 = vld [vmem:[#allocation2 + $0x46] sm:$0xff]
        %v1444 = vld [vmem:[#allocation2 + $0x4e] sm:$0xff]
        %v1445 = vld [vmem:[#allocation2 + $0x56] sm:$0xff]
        %v1446 = vld [vmem:[#allocation2 + $0x5e] sm:$0xff]
        %v1447 = vld [vmem:[#allocation2 + $0x66] sm:$0xff]
        %v1448 = vld [vmem:[#allocation2 + $0x6e] sm:$0xff]
        %v1449 = vld [vmem:[#allocation2 + $0x76] sm:$0xff]
        %v1450 = vld [vmem:[#allocation2 + $0x7e] sm:$0xff]
        %v1451 = vld [vmem:[#allocation2 + $0x86] sm:$0xff]
        %v1452 = vld [vmem:[#allocation2 + $0x8e] sm:$0xff]
        %v1453 = vld [vmem:[#allocation2 + $0x96] sm:$0xff]
        %v1454 = vpack.c.bf16 %v1439, %v1438
        %v1455 = vpack.c.bf16 %v1441, %v1440
        %v1456 = vpack.c.bf16 %v1443, %v1442
        %v1457 = vpack.c.bf16 %v1445, %v1444
        %v1458 = vpack.c.bf16 %v1447, %v1446
        %v1459 = vpack.c.bf16 %v1449, %v1448
        %v1460 = vpack.c.bf16 %v1451, %v1450
        %v1461 = vpack.c.bf16 %v1453, %v1452
        %s1462 = scalar_lea.vmem [#allocation4], 512
        %v1463 = vld [vmem:[%s1462] sm:$0xf]
        %v1464 = vld [vmem:[%s1462 + $0x4] sm:$0xf]
        %v1465 = vld [vmem:[%s1462 + $0x8] sm:$0xf]
        %v1466 = vld [vmem:[%s1462 + $0xc] sm:$0xf]
        %v1467 = vld [vmem:[%s1462 + $0x10] sm:$0xf]
        %v1468 = vld [vmem:[%s1462 + $0x14] sm:$0xf]
        %v1469 = vld [vmem:[%s1462 + $0x18] sm:$0xf]
        %v1470 = vld [vmem:[%s1462 + $0x1c] sm:$0xf]
        %v1471 = vld [vmem:[%s1462 + $0x20] sm:$0xf]
        %v1472 = vld [vmem:[%s1462 + $0x24] sm:$0xf]
        %v1473 = vld [vmem:[%s1462 + $0x28] sm:$0xf]
        %v1474 = vld [vmem:[%s1462 + $0x2c] sm:$0xf]
        %v1475 = vld [vmem:[%s1462 + $0x30] sm:$0xf]
        %v1476 = vld [vmem:[%s1462 + $0x34] sm:$0xf]
        %v1477 = vld [vmem:[%s1462 + $0x38] sm:$0xf]
        %v1478 = vld [vmem:[%s1462 + $0x3c] sm:$0xf]
        %v1495 = vunpack.c.l.b16 %v1463
        %v1496 = vunpack.c.l.b16 %v1464
        %v1497 = vunpack.c.l.b16 %v1465
        %v1498 = vunpack.c.l.b16 %v1466
        %v1499 = vunpack.c.l.b16 %v1467
        %v1500 = vunpack.c.l.b16 %v1468
        %v1501 = vunpack.c.l.b16 %v1469
        %v1502 = vunpack.c.l.b16 %v1470
        %v1503 = vunpack.c.l.b16 %v1471
        %v1504 = vunpack.c.l.b16 %v1472
        %v1505 = vunpack.c.l.b16 %v1473
        %v1506 = vunpack.c.l.b16 %v1474
        %v1507 = vunpack.c.l.b16 %v1475
        %v1508 = vunpack.c.l.b16 %v1476
        %v1509 = vunpack.c.l.b16 %v1477
        %v1510 = vunpack.c.l.b16 %v1478
        %v1511 = vpack.c.b16 %v1496, %v1495
        %v1512 = vpack.c.b16 %v1498, %v1497
        %v1513 = vpack.c.b16 %v1500, %v1499
        %v1514 = vpack.c.b16 %v1502, %v1501
        %v1515 = vpack.c.b16 %v1504, %v1503
        %v1516 = vpack.c.b16 %v1506, %v1505
        %v1517 = vpack.c.b16 %v1508, %v1507
        %v1518 = vpack.c.b16 %v1510, %v1509
        %1527 = vmatpush.bf16.msra.mxu0 %v1518
        %1528 = vmatpush.bf16.msra.mxu0 %v1517
        %1529 = vmatpush.bf16.msra.mxu0 %v1516
        %1530 = vmatpush.bf16.msra.mxu0 %v1515
        %1531 = vmatpush.bf16.msra.mxu0 %v1514
        %1532 = vmatpush.bf16.msra.mxu0 %v1513
        %1533 = vmatpush.bf16.msra.mxu0 %v1512
        %1534 = vmatpush.bf16.msra.mxu0 %v1511
        %1535 = vmatmul.bf16.gmra.mxu0 %v1454
        %v1536 = vpop.f32.mrf.mxu0
        %v1537 = vadd.f32 0.0, %v1536
        %v1538 = vpop.f32.mrf.mxu0
        %v1539 = vadd.f32 0.0, %v1538
        %1540 = vmatmul.bf16.gmra.mxu0 %v1455
        %v1541 = vpop.f32.mrf.mxu0
        %v1542 = vadd.f32 0.0, %v1541
        %v1543 = vpop.f32.mrf.mxu0
        %v1544 = vadd.f32 0.0, %v1543
        %1545 = vmatmul.bf16.gmra.mxu0 %v1456
        %v1546 = vpop.f32.mrf.mxu0
        %v1547 = vadd.f32 0.0, %v1546
        %v1548 = vpop.f32.mrf.mxu0
        %v1549 = vadd.f32 0.0, %v1548
        %1550 = vmatmul.bf16.gmra.mxu0 %v1457
        %v1551 = vpop.f32.mrf.mxu0
        %v1552 = vadd.f32 0.0, %v1551
        %v1553 = vpop.f32.mrf.mxu0
        %v1554 = vadd.f32 0.0, %v1553
        %1555 = vmatmul.bf16.gmra.mxu0 %v1458
        %v1556 = vpop.f32.mrf.mxu0
        %v1557 = vadd.f32 0.0, %v1556
        %v1558 = vpop.f32.mrf.mxu0
        %v1559 = vadd.f32 0.0, %v1558
        %1560 = vmatmul.bf16.gmra.mxu0 %v1459
        %v1561 = vpop.f32.mrf.mxu0
        %v1562 = vadd.f32 0.0, %v1561
        %v1563 = vpop.f32.mrf.mxu0
        %v1564 = vadd.f32 0.0, %v1563
        %1565 = vmatmul.bf16.gmra.mxu0 %v1460
        %v1566 = vpop.f32.mrf.mxu0
        %v1567 = vadd.f32 0.0, %v1566
        %v1568 = vpop.f32.mrf.mxu0
        %v1569 = vadd.f32 0.0, %v1568
        %1570 = vmatmul.bf16.gmra.mxu0 %v1461
        %v1571 = vpop.f32.mrf.mxu0
        %v1572 = vadd.f32 0.0, %v1571
        %v1573 = vpop.f32.mrf.mxu0
        %v1574 = vadd.f32 0.0, %v1573
        %1575 = vdwg.mxu0
        %v1576 = vadd.f32 %v1422, %v1537
        %v1577 = vadd.f32 %v1423, %v1539
        %v1578 = vadd.f32 %v1424, %v1542
        %v1579 = vadd.f32 %v1425, %v1544
        %v1580 = vadd.f32 %v1426, %v1547
        %v1581 = vadd.f32 %v1427, %v1549
        %v1582 = vadd.f32 %v1428, %v1552
        %v1583 = vadd.f32 %v1429, %v1554
        %v1584 = vadd.f32 %v1430, %v1557
        %v1585 = vadd.f32 %v1431, %v1559
        %v1586 = vadd.f32 %v1432, %v1562
        %v1587 = vadd.f32 %v1433, %v1564
        %v1588 = vadd.f32 %v1434, %v1567
        %v1589 = vadd.f32 %v1435, %v1569
        %v1590 = vadd.f32 %v1436, %v1572
        %v1591 = vadd.f32 %v1437, %v1574
        %v1592 = vld [vmem:[%s212] sm:$0x1]
        %v1594 = vperm.slane %v1592, 0
        %v1596 = vmul.f32 %v1576, %v1594
        %v1597 = vmul.f32 %v1577, %v1594
        %v1598 = vmul.f32 %v1578, %v1594
        %v1599 = vmul.f32 %v1579, %v1594
        %v1600 = vmul.f32 %v1580, %v1594
        %v1601 = vmul.f32 %v1581, %v1594
        %v1602 = vmul.f32 %v1582, %v1594
        %v1603 = vmul.f32 %v1583, %v1594
        %v1604 = vmul.f32 %v1584, %v1594
        %v1605 = vmul.f32 %v1585, %v1594
        %v1606 = vmul.f32 %v1586, %v1594
        %v1607 = vmul.f32 %v1587, %v1594
        %v1608 = vmul.f32 %v1588, %v1594
        %v1609 = vmul.f32 %v1589, %v1594
        %v1610 = vmul.f32 %v1590, %v1594
        %v1611 = vmul.f32 %v1591, %v1594
        %v1612 = vld [vmem:[%s215] sm:$0x1]
        %v1614 = vperm.slane %v1612, 0
        %v1616 = vadd.f32 %v1596, %v1614
        %v1617 = vadd.f32 %v1597, %v1614
        %v1618 = vadd.f32 %v1598, %v1614
        %v1619 = vadd.f32 %v1599, %v1614
        %v1620 = vadd.f32 %v1600, %v1614
        %v1621 = vadd.f32 %v1601, %v1614
        %v1622 = vadd.f32 %v1602, %v1614
        %v1623 = vadd.f32 %v1603, %v1614
        %v1624 = vadd.f32 %v1604, %v1614
        %v1625 = vadd.f32 %v1605, %v1614
        %v1626 = vadd.f32 %v1606, %v1614
        %v1627 = vadd.f32 %v1607, %v1614
        %v1628 = vadd.f32 %v1608, %v1614
        %v1629 = vadd.f32 %v1609, %v1614
        %v1630 = vadd.f32 %v1610, %v1614
        %v1631 = vadd.f32 %v1611, %v1614
        %v1632 = vpack.c.bf16 %v1616, %v1616
        %v1633 = vpack.c.bf16 %v1617, %v1617
        %v1634 = vpack.c.bf16 %v1618, %v1618
        %v1635 = vpack.c.bf16 %v1619, %v1619
        %v1636 = vpack.c.bf16 %v1620, %v1620
        %v1637 = vpack.c.bf16 %v1621, %v1621
        %v1638 = vpack.c.bf16 %v1622, %v1622
        %v1639 = vpack.c.bf16 %v1623, %v1623
        %v1640 = vpack.c.bf16 %v1624, %v1624
        %v1641 = vpack.c.bf16 %v1625, %v1625
        %v1642 = vpack.c.bf16 %v1626, %v1626
        %v1643 = vpack.c.bf16 %v1627, %v1627
        %v1644 = vpack.c.bf16 %v1628, %v1628
        %v1645 = vpack.c.bf16 %v1629, %v1629
        %v1646 = vpack.c.bf16 %v1630, %v1630
        %v1647 = vpack.c.bf16 %v1631, %v1631
        %1648 = vst [vmem:[%s209] sm:$0xf] %v1632
        %1649 = vst [vmem:[%s209 + $0x4] sm:$0xf] %v1633
        %1650 = vst [vmem:[%s209 + $0x8] sm:$0xf] %v1634
        %1651 = vst [vmem:[%s209 + $0xc] sm:$0xf] %v1635
        %1652 = vst [vmem:[%s209 + $0x10] sm:$0xf] %v1636
        %1653 = vst [vmem:[%s209 + $0x14] sm:$0xf] %v1637
        %1654 = vst [vmem:[%s209 + $0x18] sm:$0xf] %v1638
        %1655 = vst [vmem:[%s209 + $0x1c] sm:$0xf] %v1639
        %1656 = vst [vmem:[%s209 + $0x20] sm:$0xf] %v1640
        %1657 = vst [vmem:[%s209 + $0x24] sm:$0xf] %v1641
        %1658 = vst [vmem:[%s209 + $0x28] sm:$0xf] %v1642
        %1659 = vst [vmem:[%s209 + $0x2c] sm:$0xf] %v1643
        %1660 = vst [vmem:[%s209 + $0x30] sm:$0xf] %v1644
        %1661 = vst [vmem:[%s209 + $0x34] sm:$0xf] %v1645
        %1662 = vst [vmem:[%s209 + $0x38] sm:$0xf] %v1646
        %1663 = vst [vmem:[%s209 + $0x3c] sm:$0xf] %v1647
        %s1664 = sand.u32 %s119, 1
        %s1665 = scalar_lea.sflag [#allocation6], %s1664
        %s1666 = sand.u32 %s119, 1
        %s1667 = smul.addr %s1666, 64
        %s1668 = scalar_lea.vmem [#allocation7], %s1667
        // Predicated region
        $region45: #{tpu_custom_call.1} parent=31 // pred_check
          %p1669 = pneg %p129
        $region46: #{tpu_custom_call.1} parent=31 // pred_check_branch
          %1671 = sbr.rel (%p1669) target = $region48
        $region47: #{tpu_custom_call.1} parent=31 // pred_region
          %s1672 = smul.u32 16, %s23
          %1674 = vsyncadd %s1665, 0
          %s1675 = sadd.s32 %s24, %s1672
          %s1676 = smul.addr %s1675, 4
          %s1677 = scalar_lea.hbm %s4, %s1676
          %s1678 = sshll.u32 %s1668, 4
          %s1679 = int_to_ptr.vmem [resolvable:$true] %s1678
          %s1680 = sshll.u32 %s1677, 4
          %s1681 = int_to_ptr.hbm [resolvable:$true] %s1680
          %1686 = dma.vmem_to_hbm [thread:$0]  %s1679, 1024, %s1681, %s1665, 64, 64, 4
        $region48: #{tpu_custom_call.1} parent=31 // pred_fallthru
          _
      $region32: #{tpu_custom_call.1} parent=5 // pred_fallthru
        _
      %p1687 = scmp.le.s32.totalorder 2, %s14
      // Predicated region
      $region49: #{tpu_custom_call.1} parent=5 // pred_check
        %p1688 = pneg %p1687
      $region50: #{tpu_custom_call.1} parent=5 // pred_check_branch
        %1690 = sbr.rel (%p1688) target = $region52
      $region51: #{tpu_custom_call.1} parent=5 // pred_region
        %s1691 = ssub.s32 %s14, 2
        // Predicated region
        $region53: #{tpu_custom_call.1} parent=51 // pred_check
          %p1692 = pneg %p135
        $region54: #{tpu_custom_call.1} parent=51 // pred_check_branch
          %1694 = sbr.rel (%p1692) target = $region56
        $region55: #{tpu_custom_call.1} parent=51 // pred_region
          %s1695 = sand.u32 %s120, 1
          %s1696 = scalar_lea.sflag [#allocation6], %s1695
          %s1697 = sand.u32 %s120, 1
          %s1698 = smul.addr %s1697, 64
          %s1699 = scalar_lea.vmem [#allocation7], %s1698
          %1701 = dma.done %s1696, 1024
        $region56: #{tpu_custom_call.1} parent=51 // pred_fallthru
          _
      $region52: #{tpu_custom_call.1} parent=5 // pred_fallthru
        _
    $region6: #{tpu_custom_call.1} parent=1 // loop_footer
      %s18 = sadd.s32 1, %s14
    $region7: #{tpu_custom_call.1} parent=1 // loop_footer_branch
      %13 = sbr.rel target = $region3
    $region8: #{tpu_custom_call.1} parent=1 // loop_exit
      _
    %1702 = vsyncpa [#allocation5], 1
    %s1703 = scalar_lea.sflag [#allocation5], 1
    %1704 = vsyncpa %s1703, 1
    %1705 = vsyncpa [#allocation6], 1
    %s1706 = scalar_lea.sflag [#allocation6], 1
    %1707 = vsyncpa %s1706, 1
  %1708 = vsyncmov [#allocation3]
  %s1709 = vpop.sfrf %1708
  %p1710 = scmp.eq.s32.totalorder %s1709, 0
  %p1711 = pneg %p1710
  %1713 = shalt.err (%p1711)

</llo_original>
